<compile_context>
chip_gen: v7x
topology: tpu7x:2x2x1
jax: 0.10.0
libtpu: 0.0.40
codegen_flags: <defaults>
</compile_context>

<pallas_src>
import jax
import jax.numpy as jnp
from jax import lax
from jax.experimental import pallas as pl
from jax.experimental.pallas import tpu as pltpu


# -----------------------------------------------------------------------------
# Fused kernel: encoder proj + decoder logits + mask + sample + stats
# -----------------------------------------------------------------------------
def actor_fused_kernel(x_ref, u01_ref, negdiag_ref, wenc_ref, benc_ref,
                       wl_ref, wrt_ref, u_ref, bias_ref,
                       enc_ref, graphs_ref, gbatch_ref, bcesum_ref, entsum_ref,
                       stat_scr):
    b = pl.program_id(0)
    nb = pl.num_programs(0)
    hd = wl_ref.shape[1]

    # ---------------- encoder (stand-in single linear) ----------------
    x = x_ref[0]                                                         # [L, Din]
    enc = (jnp.dot(x, wenc_ref[...], preferred_element_type=jnp.float32)
           + benc_ref[...])                                              # [L, H]
    enc_ref[0] = enc.astype(enc_ref.dtype)

    # ---------------- decoder projections ----------------
    dot_l = jnp.dot(enc, wl_ref[...],
                    preferred_element_type=jnp.float32)                  # [L, Hd]
    # dot_r directly in transposed layout [Hd, L]: W_r^T[Hd,H] (.) enc[L,H]
    # contracted over H (A @ B^T form) -> rows broadcast along sublanes.
    dot_rt = lax.dot_general(wrt_ref[...], enc,
                             dimension_numbers=(((1,), (1,)), ((), ())),
                             preferred_element_type=jnp.float32)         # [Hd, L]

    # ---------------- pairwise tanh contraction (lane-dense accumulate) ------
    # masked[i, j] = sum_h U[h]*tanh(dot_l[i,h] + dot_r[j,h]) + bias - 1e8*(i==j)
    masked = negdiag_ref[...] + bias_ref[0]                              # [L, L]
    for h in range(hd):      # Hd is small here -> fully unrolled per-element loop
        masked = masked + u_ref[h] * jnp.tanh(dot_l[:, h:h + 1]
                                              + dot_rt[h:h + 1, :])

    # ---------------- sampling + statistics (EUP-CSE'd) ----------------
    e = jnp.exp(-jnp.abs(masked))                 # single exp per element
    sp_core = jnp.log(1.0 + e)                    # single log per element
    relu_p = jnp.maximum(masked, 0.0)
    relu_n = relu_p - masked                      # = max(-masked, 0)
    inv = 1.0 / (1.0 + e)
    p = jnp.where(masked >= 0.0, inv, e * inv)    # sigmoid(masked)

    sample = (u01_ref[0] < p).astype(jnp.float32)  # Bernoulli(p) draw
    graphs_ref[0] = sample

    # graph_batch = mean over batch of the samples (resident VMEM accumulator).
    @pl.when(b == 0)
    def _init():
        gbatch_ref[...] = jnp.zeros_like(gbatch_ref)

    gbatch_ref[...] += sample

    @pl.when(b == nb - 1)
    def _finalize():
        gbatch_ref[...] = gbatch_ref[...] * (1.0 / nb)

    # BCE-with-logits and Bernoulli entropy (per-batch sums -> SMEM scalars).
    bce = relu_p - masked * sample + sp_core
    ent = sp_core + p * relu_n + (1.0 - p) * relu_p

    # Reduce lanes then sublanes (keepdims), park the (1,1) results in a tiny
    # VMEM scratch, then move the scalars to the SMEM outputs.
    stat_scr[0:1, :] = jnp.sum(jnp.sum(bce, axis=1, keepdims=True),
                               axis=0, keepdims=True)
    stat_scr[1:2, :] = jnp.sum(jnp.sum(ent, axis=1, keepdims=True),
                               axis=0, keepdims=True)
    bcesum_ref[b] = stat_scr[0, 0]
    entsum_ref[b] = stat_scr[1, 0]


# -----------------------------------------------------------------------------
# Wrapper
# -----------------------------------------------------------------------------
@jax.jit
def actor_forward(x, params, sample_key):
    B, L, Din = x.shape
    H = params["W_enc"].shape[1]
    Hd = params["W_l"].shape[1]

    # Cheap host/XLA-side prep (outside the kernel): uniforms for Bernoulli
    # sampling, the constant diagonal mask (hoisted), W_r pre-transposed for
    # the NT matmul inside the kernel.
    u01 = jax.random.uniform(sample_key, (B, L, L), jnp.float32)
    neg_diag = -1e8 * jnp.eye(L, dtype=jnp.float32)
    w_r_t = params["W_r"].T                                   # [Hd, H]

    smem = pl.BlockSpec(memory_space=pltpu.MemorySpace.SMEM)

    enc, graphs, graph_batch, bce_sums, ent_sums = pl.pallas_call(
        actor_fused_kernel,
        out_shape=(
            jax.ShapeDtypeStruct((B, L, H), jnp.float32),     # encoder output
            jax.ShapeDtypeStruct((B, L, L), jnp.float32),     # graphs (samples)
            jax.ShapeDtypeStruct((L, L), jnp.float32),        # graph_batch
            jax.ShapeDtypeStruct((B,), jnp.float32),          # per-batch BCE sums
            jax.ShapeDtypeStruct((B,), jnp.float32),          # per-batch entropy sums
        ),
        grid=(B,),
        in_specs=[
            pl.BlockSpec((1, L, Din), lambda b: (b, 0, 0)),   # x
            pl.BlockSpec((1, L, L), lambda b: (b, 0, 0)),     # uniforms
            pl.BlockSpec((L, L), lambda b: (0, 0)),           # -1e8 * I (resident)
            pl.BlockSpec((Din, H), lambda b: (0, 0)),         # W_enc
            pl.BlockSpec((1, H), lambda b: (0, 0)),           # b_enc
            pl.BlockSpec((H, Hd), lambda b: (0, 0)),          # W_l
            pl.BlockSpec((Hd, H), lambda b: (0, 0)),          # W_r^T
            smem,                                             # U      (Hd,)
            smem,                                             # bias   (1,)
        ],
        out_specs=(
            pl.BlockSpec((1, L, H), lambda b: (b, 0, 0)),
            pl.BlockSpec((1, L, L), lambda b: (b, 0, 0)),
            pl.BlockSpec((L, L), lambda b: (0, 0)),           # resident accumulator
            smem,
            smem,
        ),
        scratch_shapes=[pltpu.VMEM((2, 1), jnp.float32)],
        compiler_params=pltpu.CompilerParams(
            # graph_batch accumulates across b -> the batch axis must be
            # "arbitrary".  (If that mean were done in the wrapper the axis
            # could be "parallel" to shard B over v7x's two TensorCores.)
            dimension_semantics=("arbitrary",)),
    )(x, u01, neg_diag, params["W_enc"], params["b_enc"], params["W_l"],
      w_r_t, params["U"], params["logit_bias"])

    # Tiny scalar epilogue: reduction='mean' over B*L*L for the BCE, per-batch
    # mean over L*L for the entropy regularization.
    log_softmax = jnp.sum(bce_sums) / (B * L * L)     # torch attribute name kept
    entropy_regularization = ent_sums / (L * L)

    # torch Actor.forward returns exactly (encoder_output, graphs, graph_batch,
    # log_softmax); entropy_regularization is a stored attribute -> returned
    # separately here.
    return (enc, graphs, graph_batch, log_softmax), entropy_regularization


# -----------------------------------------------------------------------------
# Deterministic parameter init + example run
# -----------------------------------------------------------------------------
def make_params(key, d_in, hidden_dim, decoder_hidden_dim):
    ks = jax.random.split(key, 5)

    def xavier(k, shape):
        fan_in, fan_out = shape
        lim = (6.0 / (fan_in + fan_out)) ** 0.5
        return jax.random.uniform(k, shape, jnp.float32, -lim, lim)

    return {
        "W_enc": xavier(ks[0], (d_in, hidden_dim)),
        "b_enc": jnp.zeros((1, hidden_dim), jnp.float32),
        "W_l": xavier(ks[1], (hidden_dim, decoder_hidden_dim)),
        "W_r": xavier(ks[2], (hidden_dim, decoder_hidden_dim)),
        "U": jax.random.uniform(ks[3], (decoder_hidden_dim,), jnp.float32),
        "logit_bias": jax.random.uniform(ks[4], (1,), jnp.float32),
    }


if __name__ == "__main__":
    B, L, D_IN, HIDDEN, DEC_HIDDEN = 2, 8, 16, 32, 32

    key = jax.random.PRNGKey(0)
    k_param, k_x, k_sample = jax.random.split(key, 3)
    params = make_params(k_param, D_IN, HIDDEN, DEC_HIDDEN)
    x = jax.random.normal(k_x, (B, L, D_IN), jnp.float32)

    (enc, graphs, graph_batch, log_softmax), ent_reg = actor_forward(
        x, params, k_sample)
    jax.block_until_ready((enc, graphs, graph_batch, log_softmax, ent_reg))

    assert enc.shape == (B, L, HIDDEN)
    assert graphs.shape == (B, L, L)
    assert graph_batch.shape == (L, L)
    assert log_softmax.shape == ()
    assert ent_reg.shape == (B,)
    # samples are binary, diagonal is masked (p underflows to exactly 0).
    assert bool(jnp.all((graphs == 0.0) | (graphs == 1.0)))
    assert float(jnp.max(jnp.abs(jnp.diagonal(graph_batch)))) == 0.0
    assert bool(jnp.isfinite(log_softmax)) and bool(jnp.all(jnp.isfinite(ent_reg)))
    print("KERNEL_OK")
</pallas_src>

<mosaic_0001>
module attributes {stable_mosaic.version = 11 : i64} {
  func.func @actor_fused_kernel(%arg0: i32, %arg1: memref<1x8x16xf32, #tpu.memory_space<vmem>>, %arg2: memref<1x8x8xf32, #tpu.memory_space<vmem>>, %arg3: memref<8x8xf32, #tpu.memory_space<vmem>>, %arg4: memref<16x32xf32, #tpu.memory_space<vmem>>, %arg5: memref<1x32xf32, #tpu.memory_space<vmem>>, %arg6: memref<32x32xf32, #tpu.memory_space<vmem>>, %arg7: memref<32x32xf32, #tpu.memory_space<vmem>>, %arg8: memref<32xf32, #tpu.memory_space<smem>>, %arg9: memref<1xf32, #tpu.memory_space<smem>>, %arg10: memref<1x8x32xf32, #tpu.memory_space<vmem>>, %arg11: memref<1x8x8xf32, #tpu.memory_space<vmem>>, %arg12: memref<8x8xf32, #tpu.memory_space<vmem>>, %arg13: memref<2xf32, #tpu.memory_space<smem>>, %arg14: memref<2xf32, #tpu.memory_space<smem>>, %arg15: memref<2x1xf32, #tpu.memory_space<vmem>>) attributes {dimension_semantics = [#tpu.dimension_semantics<arbitrary>], iteration_bounds = array<i64: 2>, scalar_prefetch = 0 : i64, scratch_operands = 1 : i64, tpu.core_type = #tpu.core_type<tc>, window_params = [{transform_indices = @transform_0, window_bounds = array<i64: 1, 8, 16>}, {transform_indices = @transform_1, window_bounds = array<i64: 1, 8, 8>}, {pipeline_mode = #tpu.pipeline_mode<synchronous>, transform_indices = @transform_2, window_bounds = array<i64: 8, 8>}, {pipeline_mode = #tpu.pipeline_mode<synchronous>, transform_indices = @transform_3, window_bounds = array<i64: 16, 32>}, {pipeline_mode = #tpu.pipeline_mode<synchronous>, transform_indices = @transform_4, window_bounds = array<i64: 1, 32>}, {pipeline_mode = #tpu.pipeline_mode<synchronous>, transform_indices = @transform_5, window_bounds = array<i64: 32, 32>}, {pipeline_mode = #tpu.pipeline_mode<synchronous>, transform_indices = @transform_6, window_bounds = array<i64: 32, 32>}, {transform_indices = @transform_7, window_bounds = array<i64: 32>}, {transform_indices = @transform_8, window_bounds = array<i64: 1>}, {transform_indices = @transform_9, window_bounds = array<i64: 1, 8, 32>}, {transform_indices = @transform_10, window_bounds = array<i64: 1, 8, 8>}, {pipeline_mode = #tpu.pipeline_mode<synchronous>, transform_indices = @transform_11, window_bounds = array<i64: 8, 8>}, {transform_indices = @transform_12, window_bounds = array<i64: 2>}, {transform_indices = @transform_13, window_bounds = array<i64: 2>}]} {
    %c0 = arith.constant 0 : index
    %c0_0 = arith.constant 0 : index
    %c0_1 = arith.constant 0 : index
    %0 = vector.load %arg1[%c0, %c0_0, %c0_1] : memref<1x8x16xf32, #tpu.memory_space<vmem>>, vector<1x8x16xf32>
    %1 = vector.shape_cast %0 : vector<1x8x16xf32> to vector<8x16xf32>
    %c0_2 = arith.constant 0 : index
    %c0_3 = arith.constant 0 : index
    %2 = vector.load %arg4[%c0_2, %c0_3] : memref<16x32xf32, #tpu.memory_space<vmem>>, vector<16x32xf32>
    %cst = arith.constant dense<0.000000e+00> : vector<8x32xf32>
    %3 = tpu.matmul %1, %2, %cst {dimension_numbers = #tpu.dot_dimension_numbers<[1], [0], [0], [1], [0, 0, 1, 1], [], []>} : vector<8x16xf32>, vector<16x32xf32>, vector<8x32xf32> -> vector<8x32xf32>
    %c0_4 = arith.constant 0 : index
    %c0_5 = arith.constant 0 : index
    %4 = vector.load %arg5[%c0_4, %c0_5] : memref<1x32xf32, #tpu.memory_space<vmem>>, vector<1x32xf32>
    %5 = vector.broadcast %4 : vector<1x32xf32> to vector<8x32xf32>
    %6 = arith.addf %3, %5 : vector<8x32xf32>
    %c0_6 = arith.constant 0 : index
    %c0_7 = arith.constant 0 : index
    %c0_8 = arith.constant 0 : index
    %7 = vector.load %arg10[%c0_6, %c0_7, %c0_8] : memref<1x8x32xf32, #tpu.memory_space<vmem>>, vector<1x8x32xf32>
    %8 = vector.shape_cast %7 : vector<1x8x32xf32> to vector<8x32xf32>
    %9 = vector.shape_cast %6 : vector<8x32xf32> to vector<1x8x32xf32>
    tpu.vector_store %arg10[%c0_6, %c0_7, %c0_8], %9 {strides = array<i32>} : memref<1x8x32xf32, #tpu.memory_space<vmem>>, vector<1x8x32xf32>,
    %c0_9 = arith.constant 0 : index
    %c0_10 = arith.constant 0 : index
    %10 = vector.load %arg6[%c0_9, %c0_10] : memref<32x32xf32, #tpu.memory_space<vmem>>, vector<32x32xf32>
    %cst_11 = arith.constant dense<0.000000e+00> : vector<8x32xf32>
    %11 = tpu.matmul %6, %10, %cst_11 {dimension_numbers = #tpu.dot_dimension_numbers<[1], [0], [0], [1], [0, 0, 1, 1], [], []>} : vector<8x32xf32>, vector<32x32xf32>, vector<8x32xf32> -> vector<8x32xf32>
    %c0_12 = arith.constant 0 : index
    %c0_13 = arith.constant 0 : index
    %12 = vector.load %arg7[%c0_12, %c0_13] : memref<32x32xf32, #tpu.memory_space<vmem>>, vector<32x32xf32>
    %cst_14 = arith.constant dense<0.000000e+00> : vector<32x8xf32>
    %13 = tpu.matmul %12, %6, %cst_14 {dimension_numbers = #tpu.dot_dimension_numbers<[1], [1], [0], [0], [0, 0, 1, 0], [], []>} : vector<32x32xf32>, vector<8x32xf32>, vector<32x8xf32> -> vector<32x8xf32>
    %c0_15 = arith.constant 0 : index
    %c0_16 = arith.constant 0 : index
    %14 = vector.load %arg3[%c0_15, %c0_16] : memref<8x8xf32, #tpu.memory_space<vmem>>, vector<8x8xf32>
    %c0_17 = arith.constant 0 : index
    %15 = memref.load %arg9[%c0_17] : memref<1xf32, #tpu.memory_space<smem>>
    %16 = vector.broadcast %15 : f32 to vector<8x8xf32>
    %17 = arith.addf %14, %16 : vector<8x8xf32>
    %c0_18 = arith.constant 0 : index
    %18 = memref.load %arg8[%c0_18] : memref<32xf32, #tpu.memory_space<smem>>
    %19 = vector.extract_strided_slice %11 {offsets = [0, 0], sizes = [8, 1], strides = [1, 1]} : vector<8x32xf32> to vector<8x1xf32>
    %20 = vector.extract_strided_slice %13 {offsets = [0, 0], sizes = [1, 8], strides = [1, 1]} : vector<32x8xf32> to vector<1x8xf32>
    %21 = vector.broadcast %19 : vector<8x1xf32> to vector<8x8xf32>
    %22 = vector.broadcast %20 : vector<1x8xf32> to vector<8x8xf32>
    %23 = arith.addf %21, %22 : vector<8x8xf32>
    %24 = math.tanh %23 : vector<8x8xf32>
    %25 = vector.broadcast %18 : f32 to vector<8x8xf32>
    %26 = arith.mulf %25, %24 : vector<8x8xf32>
    %27 = arith.addf %17, %26 : vector<8x8xf32>
    %c1 = arith.constant 1 : index
    %28 = memref.load %arg8[%c1] : memref<32xf32, #tpu.memory_space<smem>>
    %29 = vector.extract_strided_slice %11 {offsets = [0, 1], sizes = [8, 1], strides = [1, 1]} : vector<8x32xf32> to vector<8x1xf32>
    %30 = vector.extract_strided_slice %13 {offsets = [1, 0], sizes = [1, 8], strides = [1, 1]} : vector<32x8xf32> to vector<1x8xf32>
    %31 = vector.broadcast %29 : vector<8x1xf32> to vector<8x8xf32>
    %32 = vector.broadcast %30 : vector<1x8xf32> to vector<8x8xf32>
    %33 = arith.addf %31, %32 : vector<8x8xf32>
    %34 = math.tanh %33 : vector<8x8xf32>
    %35 = vector.broadcast %28 : f32 to vector<8x8xf32>
    %36 = arith.mulf %35, %34 : vector<8x8xf32>
    %37 = arith.addf %27, %36 : vector<8x8xf32>
    %c2 = arith.constant 2 : index
    %38 = memref.load %arg8[%c2] : memref<32xf32, #tpu.memory_space<smem>>
    %39 = vector.extract_strided_slice %11 {offsets = [0, 2], sizes = [8, 1], strides = [1, 1]} : vector<8x32xf32> to vector<8x1xf32>
    %40 = vector.extract_strided_slice %13 {offsets = [2, 0], sizes = [1, 8], strides = [1, 1]} : vector<32x8xf32> to vector<1x8xf32>
    %41 = vector.broadcast %39 : vector<8x1xf32> to vector<8x8xf32>
    %42 = vector.broadcast %40 : vector<1x8xf32> to vector<8x8xf32>
    %43 = arith.addf %41, %42 : vector<8x8xf32>
    %44 = math.tanh %43 : vector<8x8xf32>
    %45 = vector.broadcast %38 : f32 to vector<8x8xf32>
    %46 = arith.mulf %45, %44 : vector<8x8xf32>
    %47 = arith.addf %37, %46 : vector<8x8xf32>
    %c3 = arith.constant 3 : index
    %48 = memref.load %arg8[%c3] : memref<32xf32, #tpu.memory_space<smem>>
    %49 = vector.extract_strided_slice %11 {offsets = [0, 3], sizes = [8, 1], strides = [1, 1]} : vector<8x32xf32> to vector<8x1xf32>
    %50 = vector.extract_strided_slice %13 {offsets = [3, 0], sizes = [1, 8], strides = [1, 1]} : vector<32x8xf32> to vector<1x8xf32>
    %51 = vector.broadcast %49 : vector<8x1xf32> to vector<8x8xf32>
    %52 = vector.broadcast %50 : vector<1x8xf32> to vector<8x8xf32>
    %53 = arith.addf %51, %52 : vector<8x8xf32>
    %54 = math.tanh %53 : vector<8x8xf32>
    %55 = vector.broadcast %48 : f32 to vector<8x8xf32>
    %56 = arith.mulf %55, %54 : vector<8x8xf32>
    %57 = arith.addf %47, %56 : vector<8x8xf32>
    %c4 = arith.constant 4 : index
    %58 = memref.load %arg8[%c4] : memref<32xf32, #tpu.memory_space<smem>>
    %59 = vector.extract_strided_slice %11 {offsets = [0, 4], sizes = [8, 1], strides = [1, 1]} : vector<8x32xf32> to vector<8x1xf32>
    %60 = vector.extract_strided_slice %13 {offsets = [4, 0], sizes = [1, 8], strides = [1, 1]} : vector<32x8xf32> to vector<1x8xf32>
    %61 = vector.broadcast %59 : vector<8x1xf32> to vector<8x8xf32>
    %62 = vector.broadcast %60 : vector<1x8xf32> to vector<8x8xf32>
    %63 = arith.addf %61, %62 : vector<8x8xf32>
    %64 = math.tanh %63 : vector<8x8xf32>
    %65 = vector.broadcast %58 : f32 to vector<8x8xf32>
    %66 = arith.mulf %65, %64 : vector<8x8xf32>
    %67 = arith.addf %57, %66 : vector<8x8xf32>
    %c5 = arith.constant 5 : index
    %68 = memref.load %arg8[%c5] : memref<32xf32, #tpu.memory_space<smem>>
    %69 = vector.extract_strided_slice %11 {offsets = [0, 5], sizes = [8, 1], strides = [1, 1]} : vector<8x32xf32> to vector<8x1xf32>
    %70 = vector.extract_strided_slice %13 {offsets = [5, 0], sizes = [1, 8], strides = [1, 1]} : vector<32x8xf32> to vector<1x8xf32>
    %71 = vector.broadcast %69 : vector<8x1xf32> to vector<8x8xf32>
    %72 = vector.broadcast %70 : vector<1x8xf32> to vector<8x8xf32>
    %73 = arith.addf %71, %72 : vector<8x8xf32>
    %74 = math.tanh %73 : vector<8x8xf32>
    %75 = vector.broadcast %68 : f32 to vector<8x8xf32>
    %76 = arith.mulf %75, %74 : vector<8x8xf32>
    %77 = arith.addf %67, %76 : vector<8x8xf32>
    %c6 = arith.constant 6 : index
    %78 = memref.load %arg8[%c6] : memref<32xf32, #tpu.memory_space<smem>>
    %79 = vector.extract_strided_slice %11 {offsets = [0, 6], sizes = [8, 1], strides = [1, 1]} : vector<8x32xf32> to vector<8x1xf32>
    %80 = vector.extract_strided_slice %13 {offsets = [6, 0], sizes = [1, 8], strides = [1, 1]} : vector<32x8xf32> to vector<1x8xf32>
    %81 = vector.broadcast %79 : vector<8x1xf32> to vector<8x8xf32>
    %82 = vector.broadcast %80 : vector<1x8xf32> to vector<8x8xf32>
    %83 = arith.addf %81, %82 : vector<8x8xf32>
    %84 = math.tanh %83 : vector<8x8xf32>
    %85 = vector.broadcast %78 : f32 to vector<8x8xf32>
    %86 = arith.mulf %85, %84 : vector<8x8xf32>
    %87 = arith.addf %77, %86 : vector<8x8xf32>
    %c7 = arith.constant 7 : index
    %88 = memref.load %arg8[%c7] : memref<32xf32, #tpu.memory_space<smem>>
    %89 = vector.extract_strided_slice %11 {offsets = [0, 7], sizes = [8, 1], strides = [1, 1]} : vector<8x32xf32> to vector<8x1xf32>
    %90 = vector.extract_strided_slice %13 {offsets = [7, 0], sizes = [1, 8], strides = [1, 1]} : vector<32x8xf32> to vector<1x8xf32>
    %91 = vector.broadcast %89 : vector<8x1xf32> to vector<8x8xf32>
    %92 = vector.broadcast %90 : vector<1x8xf32> to vector<8x8xf32>
    %93 = arith.addf %91, %92 : vector<8x8xf32>
    %94 = math.tanh %93 : vector<8x8xf32>
    %95 = vector.broadcast %88 : f32 to vector<8x8xf32>
    %96 = arith.mulf %95, %94 : vector<8x8xf32>
    %97 = arith.addf %87, %96 : vector<8x8xf32>
    %c8 = arith.constant 8 : index
    %98 = memref.load %arg8[%c8] : memref<32xf32, #tpu.memory_space<smem>>
    %99 = vector.extract_strided_slice %11 {offsets = [0, 8], sizes = [8, 1], strides = [1, 1]} : vector<8x32xf32> to vector<8x1xf32>
    %100 = vector.extract_strided_slice %13 {offsets = [8, 0], sizes = [1, 8], strides = [1, 1]} : vector<32x8xf32> to vector<1x8xf32>
    %101 = vector.broadcast %99 : vector<8x1xf32> to vector<8x8xf32>
    %102 = vector.broadcast %100 : vector<1x8xf32> to vector<8x8xf32>
    %103 = arith.addf %101, %102 : vector<8x8xf32>
    %104 = math.tanh %103 : vector<8x8xf32>
    %105 = vector.broadcast %98 : f32 to vector<8x8xf32>
    %106 = arith.mulf %105, %104 : vector<8x8xf32>
    %107 = arith.addf %97, %106 : vector<8x8xf32>
    %c9 = arith.constant 9 : index
    %108 = memref.load %arg8[%c9] : memref<32xf32, #tpu.memory_space<smem>>
    %109 = vector.extract_strided_slice %11 {offsets = [0, 9], sizes = [8, 1], strides = [1, 1]} : vector<8x32xf32> to vector<8x1xf32>
    %110 = vector.extract_strided_slice %13 {offsets = [9, 0], sizes = [1, 8], strides = [1, 1]} : vector<32x8xf32> to vector<1x8xf32>
    %111 = vector.broadcast %109 : vector<8x1xf32> to vector<8x8xf32>
    %112 = vector.broadcast %110 : vector<1x8xf32> to vector<8x8xf32>
    %113 = arith.addf %111, %112 : vector<8x8xf32>
    %114 = math.tanh %113 : vector<8x8xf32>
    %115 = vector.broadcast %108 : f32 to vector<8x8xf32>
    %116 = arith.mulf %115, %114 : vector<8x8xf32>
    %117 = arith.addf %107, %116 : vector<8x8xf32>
    %c10 = arith.constant 10 : index
    %118 = memref.load %arg8[%c10] : memref<32xf32, #tpu.memory_space<smem>>
    %119 = vector.extract_strided_slice %11 {offsets = [0, 10], sizes = [8, 1], strides = [1, 1]} : vector<8x32xf32> to vector<8x1xf32>
    %120 = vector.extract_strided_slice %13 {offsets = [10, 0], sizes = [1, 8], strides = [1, 1]} : vector<32x8xf32> to vector<1x8xf32>
    %121 = vector.broadcast %119 : vector<8x1xf32> to vector<8x8xf32>
    %122 = vector.broadcast %120 : vector<1x8xf32> to vector<8x8xf32>
    %123 = arith.addf %121, %122 : vector<8x8xf32>
    %124 = math.tanh %123 : vector<8x8xf32>
    %125 = vector.broadcast %118 : f32 to vector<8x8xf32>
    %126 = arith.mulf %125, %124 : vector<8x8xf32>
    %127 = arith.addf %117, %126 : vector<8x8xf32>
    %c11 = arith.constant 11 : index
    %128 = memref.load %arg8[%c11] : memref<32xf32, #tpu.memory_space<smem>>
    %129 = vector.extract_strided_slice %11 {offsets = [0, 11], sizes = [8, 1], strides = [1, 1]} : vector<8x32xf32> to vector<8x1xf32>
    %130 = vector.extract_strided_slice %13 {offsets = [11, 0], sizes = [1, 8], strides = [1, 1]} : vector<32x8xf32> to vector<1x8xf32>
    %131 = vector.broadcast %129 : vector<8x1xf32> to vector<8x8xf32>
    %132 = vector.broadcast %130 : vector<1x8xf32> to vector<8x8xf32>
    %133 = arith.addf %131, %132 : vector<8x8xf32>
    %134 = math.tanh %133 : vector<8x8xf32>
    %135 = vector.broadcast %128 : f32 to vector<8x8xf32>
    %136 = arith.mulf %135, %134 : vector<8x8xf32>
    %137 = arith.addf %127, %136 : vector<8x8xf32>
    %c12 = arith.constant 12 : index
    %138 = memref.load %arg8[%c12] : memref<32xf32, #tpu.memory_space<smem>>
    %139 = vector.extract_strided_slice %11 {offsets = [0, 12], sizes = [8, 1], strides = [1, 1]} : vector<8x32xf32> to vector<8x1xf32>
    %140 = vector.extract_strided_slice %13 {offsets = [12, 0], sizes = [1, 8], strides = [1, 1]} : vector<32x8xf32> to vector<1x8xf32>
    %141 = vector.broadcast %139 : vector<8x1xf32> to vector<8x8xf32>
    %142 = vector.broadcast %140 : vector<1x8xf32> to vector<8x8xf32>
    %143 = arith.addf %141, %142 : vector<8x8xf32>
    %144 = math.tanh %143 : vector<8x8xf32>
    %145 = vector.broadcast %138 : f32 to vector<8x8xf32>
    %146 = arith.mulf %145, %144 : vector<8x8xf32>
    %147 = arith.addf %137, %146 : vector<8x8xf32>
    %c13 = arith.constant 13 : index
    %148 = memref.load %arg8[%c13] : memref<32xf32, #tpu.memory_space<smem>>
    %149 = vector.extract_strided_slice %11 {offsets = [0, 13], sizes = [8, 1], strides = [1, 1]} : vector<8x32xf32> to vector<8x1xf32>
    %150 = vector.extract_strided_slice %13 {offsets = [13, 0], sizes = [1, 8], strides = [1, 1]} : vector<32x8xf32> to vector<1x8xf32>
    %151 = vector.broadcast %149 : vector<8x1xf32> to vector<8x8xf32>
    %152 = vector.broadcast %150 : vector<1x8xf32> to vector<8x8xf32>
    %153 = arith.addf %151, %152 : vector<8x8xf32>
    %154 = math.tanh %153 : vector<8x8xf32>
    %155 = vector.broadcast %148 : f32 to vector<8x8xf32>
    %156 = arith.mulf %155, %154 : vector<8x8xf32>
    %157 = arith.addf %147, %156 : vector<8x8xf32>
    %c14 = arith.constant 14 : index
    %158 = memref.load %arg8[%c14] : memref<32xf32, #tpu.memory_space<smem>>
    %159 = vector.extract_strided_slice %11 {offsets = [0, 14], sizes = [8, 1], strides = [1, 1]} : vector<8x32xf32> to vector<8x1xf32>
    %160 = vector.extract_strided_slice %13 {offsets = [14, 0], sizes = [1, 8], strides = [1, 1]} : vector<32x8xf32> to vector<1x8xf32>
    %161 = vector.broadcast %159 : vector<8x1xf32> to vector<8x8xf32>
    %162 = vector.broadcast %160 : vector<1x8xf32> to vector<8x8xf32>
    %163 = arith.addf %161, %162 : vector<8x8xf32>
    %164 = math.tanh %163 : vector<8x8xf32>
    %165 = vector.broadcast %158 : f32 to vector<8x8xf32>
    %166 = arith.mulf %165, %164 : vector<8x8xf32>
    %167 = arith.addf %157, %166 : vector<8x8xf32>
    %c15 = arith.constant 15 : index
    %168 = memref.load %arg8[%c15] : memref<32xf32, #tpu.memory_space<smem>>
    %169 = vector.extract_strided_slice %11 {offsets = [0, 15], sizes = [8, 1], strides = [1, 1]} : vector<8x32xf32> to vector<8x1xf32>
    %170 = vector.extract_strided_slice %13 {offsets = [15, 0], sizes = [1, 8], strides = [1, 1]} : vector<32x8xf32> to vector<1x8xf32>
    %171 = vector.broadcast %169 : vector<8x1xf32> to vector<8x8xf32>
    %172 = vector.broadcast %170 : vector<1x8xf32> to vector<8x8xf32>
    %173 = arith.addf %171, %172 : vector<8x8xf32>
    %174 = math.tanh %173 : vector<8x8xf32>
    %175 = vector.broadcast %168 : f32 to vector<8x8xf32>
    %176 = arith.mulf %175, %174 : vector<8x8xf32>
    %177 = arith.addf %167, %176 : vector<8x8xf32>
    %c16 = arith.constant 16 : index
    %178 = memref.load %arg8[%c16] : memref<32xf32, #tpu.memory_space<smem>>
    %179 = vector.extract_strided_slice %11 {offsets = [0, 16], sizes = [8, 1], strides = [1, 1]} : vector<8x32xf32> to vector<8x1xf32>
    %180 = vector.extract_strided_slice %13 {offsets = [16, 0], sizes = [1, 8], strides = [1, 1]} : vector<32x8xf32> to vector<1x8xf32>
    %181 = vector.broadcast %179 : vector<8x1xf32> to vector<8x8xf32>
    %182 = vector.broadcast %180 : vector<1x8xf32> to vector<8x8xf32>
    %183 = arith.addf %181, %182 : vector<8x8xf32>
    %184 = math.tanh %183 : vector<8x8xf32>
    %185 = vector.broadcast %178 : f32 to vector<8x8xf32>
    %186 = arith.mulf %185, %184 : vector<8x8xf32>
    %187 = arith.addf %177, %186 : vector<8x8xf32>
    %c17 = arith.constant 17 : index
    %188 = memref.load %arg8[%c17] : memref<32xf32, #tpu.memory_space<smem>>
    %189 = vector.extract_strided_slice %11 {offsets = [0, 17], sizes = [8, 1], strides = [1, 1]} : vector<8x32xf32> to vector<8x1xf32>
    %190 = vector.extract_strided_slice %13 {offsets = [17, 0], sizes = [1, 8], strides = [1, 1]} : vector<32x8xf32> to vector<1x8xf32>
    %191 = vector.broadcast %189 : vector<8x1xf32> to vector<8x8xf32>
    %192 = vector.broadcast %190 : vector<1x8xf32> to vector<8x8xf32>
    %193 = arith.addf %191, %192 : vector<8x8xf32>
    %194 = math.tanh %193 : vector<8x8xf32>
    %195 = vector.broadcast %188 : f32 to vector<8x8xf32>
    %196 = arith.mulf %195, %194 : vector<8x8xf32>
    %197 = arith.addf %187, %196 : vector<8x8xf32>
    %c18 = arith.constant 18 : index
    %198 = memref.load %arg8[%c18] : memref<32xf32, #tpu.memory_space<smem>>
    %199 = vector.extract_strided_slice %11 {offsets = [0, 18], sizes = [8, 1], strides = [1, 1]} : vector<8x32xf32> to vector<8x1xf32>
    %200 = vector.extract_strided_slice %13 {offsets = [18, 0], sizes = [1, 8], strides = [1, 1]} : vector<32x8xf32> to vector<1x8xf32>
    %201 = vector.broadcast %199 : vector<8x1xf32> to vector<8x8xf32>
    %202 = vector.broadcast %200 : vector<1x8xf32> to vector<8x8xf32>
    %203 = arith.addf %201, %202 : vector<8x8xf32>
    %204 = math.tanh %203 : vector<8x8xf32>
    %205 = vector.broadcast %198 : f32 to vector<8x8xf32>
    %206 = arith.mulf %205, %204 : vector<8x8xf32>
    %207 = arith.addf %197, %206 : vector<8x8xf32>
    %c19 = arith.constant 19 : index
    %208 = memref.load %arg8[%c19] : memref<32xf32, #tpu.memory_space<smem>>
    %209 = vector.extract_strided_slice %11 {offsets = [0, 19], sizes = [8, 1], strides = [1, 1]} : vector<8x32xf32> to vector<8x1xf32>
    %210 = vector.extract_strided_slice %13 {offsets = [19, 0], sizes = [1, 8], strides = [1, 1]} : vector<32x8xf32> to vector<1x8xf32>
    %211 = vector.broadcast %209 : vector<8x1xf32> to vector<8x8xf32>
    %212 = vector.broadcast %210 : vector<1x8xf32> to vector<8x8xf32>
    %213 = arith.addf %211, %212 : vector<8x8xf32>
    %214 = math.tanh %213 : vector<8x8xf32>
    %215 = vector.broadcast %208 : f32 to vector<8x8xf32>
    %216 = arith.mulf %215, %214 : vector<8x8xf32>
    %217 = arith.addf %207, %216 : vector<8x8xf32>
    %c20 = arith.constant 20 : index
    %218 = memref.load %arg8[%c20] : memref<32xf32, #tpu.memory_space<smem>>
    %219 = vector.extract_strided_slice %11 {offsets = [0, 20], sizes = [8, 1], strides = [1, 1]} : vector<8x32xf32> to vector<8x1xf32>
    %220 = vector.extract_strided_slice %13 {offsets = [20, 0], sizes = [1, 8], strides = [1, 1]} : vector<32x8xf32> to vector<1x8xf32>
    %221 = vector.broadcast %219 : vector<8x1xf32> to vector<8x8xf32>
    %222 = vector.broadcast %220 : vector<1x8xf32> to vector<8x8xf32>
    %223 = arith.addf %221, %222 : vector<8x8xf32>
    %224 = math.tanh %223 : vector<8x8xf32>
    %225 = vector.broadcast %218 : f32 to vector<8x8xf32>
    %226 = arith.mulf %225, %224 : vector<8x8xf32>
    %227 = arith.addf %217, %226 : vector<8x8xf32>
    %c21 = arith.constant 21 : index
    %228 = memref.load %arg8[%c21] : memref<32xf32, #tpu.memory_space<smem>>
    %229 = vector.extract_strided_slice %11 {offsets = [0, 21], sizes = [8, 1], strides = [1, 1]} : vector<8x32xf32> to vector<8x1xf32>
    %230 = vector.extract_strided_slice %13 {offsets = [21, 0], sizes = [1, 8], strides = [1, 1]} : vector<32x8xf32> to vector<1x8xf32>
    %231 = vector.broadcast %229 : vector<8x1xf32> to vector<8x8xf32>
    %232 = vector.broadcast %230 : vector<1x8xf32> to vector<8x8xf32>
    %233 = arith.addf %231, %232 : vector<8x8xf32>
    %234 = math.tanh %233 : vector<8x8xf32>
    %235 = vector.broadcast %228 : f32 to vector<8x8xf32>
    %236 = arith.mulf %235, %234 : vector<8x8xf32>
    %237 = arith.addf %227, %236 : vector<8x8xf32>
    %c22 = arith.constant 22 : index
    %238 = memref.load %arg8[%c22] : memref<32xf32, #tpu.memory_space<smem>>
    %239 = vector.extract_strided_slice %11 {offsets = [0, 22], sizes = [8, 1], strides = [1, 1]} : vector<8x32xf32> to vector<8x1xf32>
    %240 = vector.extract_strided_slice %13 {offsets = [22, 0], sizes = [1, 8], strides = [1, 1]} : vector<32x8xf32> to vector<1x8xf32>
    %241 = vector.broadcast %239 : vector<8x1xf32> to vector<8x8xf32>
    %242 = vector.broadcast %240 : vector<1x8xf32> to vector<8x8xf32>
    %243 = arith.addf %241, %242 : vector<8x8xf32>
    %244 = math.tanh %243 : vector<8x8xf32>
    %245 = vector.broadcast %238 : f32 to vector<8x8xf32>
    %246 = arith.mulf %245, %244 : vector<8x8xf32>
    %247 = arith.addf %237, %246 : vector<8x8xf32>
    %c23 = arith.constant 23 : index
    %248 = memref.load %arg8[%c23] : memref<32xf32, #tpu.memory_space<smem>>
    %249 = vector.extract_strided_slice %11 {offsets = [0, 23], sizes = [8, 1], strides = [1, 1]} : vector<8x32xf32> to vector<8x1xf32>
    %250 = vector.extract_strided_slice %13 {offsets = [23, 0], sizes = [1, 8], strides = [1, 1]} : vector<32x8xf32> to vector<1x8xf32>
    %251 = vector.broadcast %249 : vector<8x1xf32> to vector<8x8xf32>
    %252 = vector.broadcast %250 : vector<1x8xf32> to vector<8x8xf32>
    %253 = arith.addf %251, %252 : vector<8x8xf32>
    %254 = math.tanh %253 : vector<8x8xf32>
    %255 = vector.broadcast %248 : f32 to vector<8x8xf32>
    %256 = arith.mulf %255, %254 : vector<8x8xf32>
    %257 = arith.addf %247, %256 : vector<8x8xf32>
    %c24 = arith.constant 24 : index
    %258 = memref.load %arg8[%c24] : memref<32xf32, #tpu.memory_space<smem>>
    %259 = vector.extract_strided_slice %11 {offsets = [0, 24], sizes = [8, 1], strides = [1, 1]} : vector<8x32xf32> to vector<8x1xf32>
    %260 = vector.extract_strided_slice %13 {offsets = [24, 0], sizes = [1, 8], strides = [1, 1]} : vector<32x8xf32> to vector<1x8xf32>
    %261 = vector.broadcast %259 : vector<8x1xf32> to vector<8x8xf32>
    %262 = vector.broadcast %260 : vector<1x8xf32> to vector<8x8xf32>
    %263 = arith.addf %261, %262 : vector<8x8xf32>
    %264 = math.tanh %263 : vector<8x8xf32>
    %265 = vector.broadcast %258 : f32 to vector<8x8xf32>
    %266 = arith.mulf %265, %264 : vector<8x8xf32>
    %267 = arith.addf %257, %266 : vector<8x8xf32>
    %c25 = arith.constant 25 : index
    %268 = memref.load %arg8[%c25] : memref<32xf32, #tpu.memory_space<smem>>
    %269 = vector.extract_strided_slice %11 {offsets = [0, 25], sizes = [8, 1], strides = [1, 1]} : vector<8x32xf32> to vector<8x1xf32>
    %270 = vector.extract_strided_slice %13 {offsets = [25, 0], sizes = [1, 8], strides = [1, 1]} : vector<32x8xf32> to vector<1x8xf32>
    %271 = vector.broadcast %269 : vector<8x1xf32> to vector<8x8xf32>
    %272 = vector.broadcast %270 : vector<1x8xf32> to vector<8x8xf32>
    %273 = arith.addf %271, %272 : vector<8x8xf32>
    %274 = math.tanh %273 : vector<8x8xf32>
    %275 = vector.broadcast %268 : f32 to vector<8x8xf32>
    %276 = arith.mulf %275, %274 : vector<8x8xf32>
    %277 = arith.addf %267, %276 : vector<8x8xf32>
    %c26 = arith.constant 26 : index
    %278 = memref.load %arg8[%c26] : memref<32xf32, #tpu.memory_space<smem>>
    %279 = vector.extract_strided_slice %11 {offsets = [0, 26], sizes = [8, 1], strides = [1, 1]} : vector<8x32xf32> to vector<8x1xf32>
    %280 = vector.extract_strided_slice %13 {offsets = [26, 0], sizes = [1, 8], strides = [1, 1]} : vector<32x8xf32> to vector<1x8xf32>
    %281 = vector.broadcast %279 : vector<8x1xf32> to vector<8x8xf32>
    %282 = vector.broadcast %280 : vector<1x8xf32> to vector<8x8xf32>
    %283 = arith.addf %281, %282 : vector<8x8xf32>
    %284 = math.tanh %283 : vector<8x8xf32>
    %285 = vector.broadcast %278 : f32 to vector<8x8xf32>
    %286 = arith.mulf %285, %284 : vector<8x8xf32>
    %287 = arith.addf %277, %286 : vector<8x8xf32>
    %c27 = arith.constant 27 : index
    %288 = memref.load %arg8[%c27] : memref<32xf32, #tpu.memory_space<smem>>
    %289 = vector.extract_strided_slice %11 {offsets = [0, 27], sizes = [8, 1], strides = [1, 1]} : vector<8x32xf32> to vector<8x1xf32>
    %290 = vector.extract_strided_slice %13 {offsets = [27, 0], sizes = [1, 8], strides = [1, 1]} : vector<32x8xf32> to vector<1x8xf32>
    %291 = vector.broadcast %289 : vector<8x1xf32> to vector<8x8xf32>
    %292 = vector.broadcast %290 : vector<1x8xf32> to vector<8x8xf32>
    %293 = arith.addf %291, %292 : vector<8x8xf32>
    %294 = math.tanh %293 : vector<8x8xf32>
    %295 = vector.broadcast %288 : f32 to vector<8x8xf32>
    %296 = arith.mulf %295, %294 : vector<8x8xf32>
    %297 = arith.addf %287, %296 : vector<8x8xf32>
    %c28 = arith.constant 28 : index
    %298 = memref.load %arg8[%c28] : memref<32xf32, #tpu.memory_space<smem>>
    %299 = vector.extract_strided_slice %11 {offsets = [0, 28], sizes = [8, 1], strides = [1, 1]} : vector<8x32xf32> to vector<8x1xf32>
    %300 = vector.extract_strided_slice %13 {offsets = [28, 0], sizes = [1, 8], strides = [1, 1]} : vector<32x8xf32> to vector<1x8xf32>
    %301 = vector.broadcast %299 : vector<8x1xf32> to vector<8x8xf32>
    %302 = vector.broadcast %300 : vector<1x8xf32> to vector<8x8xf32>
    %303 = arith.addf %301, %302 : vector<8x8xf32>
    %304 = math.tanh %303 : vector<8x8xf32>
    %305 = vector.broadcast %298 : f32 to vector<8x8xf32>
    %306 = arith.mulf %305, %304 : vector<8x8xf32>
    %307 = arith.addf %297, %306 : vector<8x8xf32>
    %c29 = arith.constant 29 : index
    %308 = memref.load %arg8[%c29] : memref<32xf32, #tpu.memory_space<smem>>
    %309 = vector.extract_strided_slice %11 {offsets = [0, 29], sizes = [8, 1], strides = [1, 1]} : vector<8x32xf32> to vector<8x1xf32>
    %310 = vector.extract_strided_slice %13 {offsets = [29, 0], sizes = [1, 8], strides = [1, 1]} : vector<32x8xf32> to vector<1x8xf32>
    %311 = vector.broadcast %309 : vector<8x1xf32> to vector<8x8xf32>
    %312 = vector.broadcast %310 : vector<1x8xf32> to vector<8x8xf32>
    %313 = arith.addf %311, %312 : vector<8x8xf32>
    %314 = math.tanh %313 : vector<8x8xf32>
    %315 = vector.broadcast %308 : f32 to vector<8x8xf32>
    %316 = arith.mulf %315, %314 : vector<8x8xf32>
    %317 = arith.addf %307, %316 : vector<8x8xf32>
    %c30 = arith.constant 30 : index
    %318 = memref.load %arg8[%c30] : memref<32xf32, #tpu.memory_space<smem>>
    %319 = vector.extract_strided_slice %11 {offsets = [0, 30], sizes = [8, 1], strides = [1, 1]} : vector<8x32xf32> to vector<8x1xf32>
    %320 = vector.extract_strided_slice %13 {offsets = [30, 0], sizes = [1, 8], strides = [1, 1]} : vector<32x8xf32> to vector<1x8xf32>
    %321 = vector.broadcast %319 : vector<8x1xf32> to vector<8x8xf32>
    %322 = vector.broadcast %320 : vector<1x8xf32> to vector<8x8xf32>
    %323 = arith.addf %321, %322 : vector<8x8xf32>
    %324 = math.tanh %323 : vector<8x8xf32>
    %325 = vector.broadcast %318 : f32 to vector<8x8xf32>
    %326 = arith.mulf %325, %324 : vector<8x8xf32>
    %327 = arith.addf %317, %326 : vector<8x8xf32>
    %c31 = arith.constant 31 : index
    %328 = memref.load %arg8[%c31] : memref<32xf32, #tpu.memory_space<smem>>
    %329 = vector.extract_strided_slice %11 {offsets = [0, 31], sizes = [8, 1], strides = [1, 1]} : vector<8x32xf32> to vector<8x1xf32>
    %330 = vector.extract_strided_slice %13 {offsets = [31, 0], sizes = [1, 8], strides = [1, 1]} : vector<32x8xf32> to vector<1x8xf32>
    %331 = vector.broadcast %329 : vector<8x1xf32> to vector<8x8xf32>
    %332 = vector.broadcast %330 : vector<1x8xf32> to vector<8x8xf32>
    %333 = arith.addf %331, %332 : vector<8x8xf32>
    %334 = math.tanh %333 : vector<8x8xf32>
    %335 = vector.broadcast %328 : f32 to vector<8x8xf32>
    %336 = arith.mulf %335, %334 : vector<8x8xf32>
    %337 = arith.addf %327, %336 : vector<8x8xf32>
    %338 = math.absf %337 : vector<8x8xf32>
    %cst_19 = arith.constant 0.000000e+00 : f32
    %339 = vector.broadcast %cst_19 : f32 to vector<8x8xf32>
    %340 = arith.subf %339, %338 : vector<8x8xf32>
    %341 = math.exp %340 : vector<8x8xf32>
    %cst_20 = arith.constant 1.000000e+00 : f32
    %342 = vector.broadcast %cst_20 : f32 to vector<8x8xf32>
    %343 = arith.addf %342, %341 : vector<8x8xf32>
    %344 = math.log %343 : vector<8x8xf32>
    %cst_21 = arith.constant 0.000000e+00 : f32
    %345 = vector.broadcast %cst_21 : f32 to vector<8x8xf32>
    %346 = arith.maximumf %337, %345 : vector<8x8xf32>
    %347 = arith.subf %346, %337 : vector<8x8xf32>
    %cst_22 = arith.constant 1.000000e+00 : f32
    %348 = vector.broadcast %cst_22 : f32 to vector<8x8xf32>
    %349 = arith.addf %348, %341 : vector<8x8xf32>
    %cst_23 = arith.constant 1.000000e+00 : f32
    %350 = vector.broadcast %cst_23 : f32 to vector<8x8xf32>
    %351 = arith.divf %350, %349 : vector<8x8xf32>
    %cst_24 = arith.constant 0.000000e+00 : f32
    %352 = vector.broadcast %cst_24 : f32 to vector<8x8xf32>
    %353 = arith.cmpf oge, %337, %352 : vector<8x8xf32>
    %354 = arith.mulf %341, %351 : vector<8x8xf32>
    %355 = arith.select %353, %351, %354 : vector<8x8xi1>, vector<8x8xf32>
    %c0_25 = arith.constant 0 : index
    %c0_26 = arith.constant 0 : index
    %c0_27 = arith.constant 0 : index
    %356 = vector.load %arg2[%c0_25, %c0_26, %c0_27] : memref<1x8x8xf32, #tpu.memory_space<vmem>>, vector<1x8x8xf32>
    %357 = vector.shape_cast %356 : vector<1x8x8xf32> to vector<8x8xf32>
    %358 = arith.cmpf olt, %357, %355 : vector<8x8xf32>
    %359 = arith.extui %358 : vector<8x8xi1> to vector<8x8xi32>
    %360 = arith.sitofp %359 : vector<8x8xi32> to vector<8x8xf32>
    %c0_28 = arith.constant 0 : index
    %c0_29 = arith.constant 0 : index
    %c0_30 = arith.constant 0 : index
    %361 = vector.load %arg11[%c0_28, %c0_29, %c0_30] : memref<1x8x8xf32, #tpu.memory_space<vmem>>, vector<1x8x8xf32>
    %362 = vector.shape_cast %361 : vector<1x8x8xf32> to vector<8x8xf32>
    %363 = vector.shape_cast %360 : vector<8x8xf32> to vector<1x8x8xf32>
    tpu.vector_store %arg11[%c0_28, %c0_29, %c0_30], %363 {strides = array<i32>} : memref<1x8x8xf32, #tpu.memory_space<vmem>>, vector<1x8x8xf32>,
    %c0_i32 = arith.constant 0 : i32
    %364 = arith.cmpi eq, %arg0, %c0_i32 : i32
    %365 = arith.extui %364 : i1 to i32
    %c0_i32_31 = arith.constant 0 : i32
    %366 = arith.cmpi ne, %365, %c0_i32_31 : i32
    scf.if %366 {
      %cst_50 = arith.constant 0.000000e+00 : f32
      %400 = vector.broadcast %cst_50 : f32 to vector<8x8xf32>
      %c0_51 = arith.constant 0 : index
      %c0_52 = arith.constant 0 : index
      %401 = vector.load %arg12[%c0_51, %c0_52] : memref<8x8xf32, #tpu.memory_space<vmem>>, vector<8x8xf32>
      tpu.vector_store %arg12[%c0_51, %c0_52], %400 {strides = array<i32>} : memref<8x8xf32, #tpu.memory_space<vmem>>, vector<8x8xf32>,
    } else {
    }
    %c0_32 = arith.constant 0 : index
    %c0_33 = arith.constant 0 : index
    %367 = vector.load %arg12[%c0_32, %c0_33] : memref<8x8xf32, #tpu.memory_space<vmem>>, vector<8x8xf32>
    %368 = arith.addf %367, %360 : vector<8x8xf32>
    %c0_34 = arith.constant 0 : index
    %c0_35 = arith.constant 0 : index
    %369 = vector.load %arg12[%c0_34, %c0_35] : memref<8x8xf32, #tpu.memory_space<vmem>>, vector<8x8xf32>
    tpu.vector_store %arg12[%c0_34, %c0_35], %368 {strides = array<i32>} : memref<8x8xf32, #tpu.memory_space<vmem>>, vector<8x8xf32>,
    %c1_i32 = arith.constant 1 : i32
    %370 = arith.cmpi eq, %arg0, %c1_i32 : i32
    %371 = arith.extui %370 : i1 to i32
    %c0_i32_36 = arith.constant 0 : i32
    %372 = arith.cmpi ne, %371, %c0_i32_36 : i32
    scf.if %372 {
      %c0_50 = arith.constant 0 : index
      %c0_51 = arith.constant 0 : index
      %400 = vector.load %arg12[%c0_50, %c0_51] : memref<8x8xf32, #tpu.memory_space<vmem>>, vector<8x8xf32>
      %cst_52 = arith.constant 5.000000e-01 : f32
      %401 = vector.broadcast %cst_52 : f32 to vector<8x8xf32>
      %402 = arith.mulf %400, %401 : vector<8x8xf32>
      %c0_53 = arith.constant 0 : index
      %c0_54 = arith.constant 0 : index
      %403 = vector.load %arg12[%c0_53, %c0_54] : memref<8x8xf32, #tpu.memory_space<vmem>>, vector<8x8xf32>
      tpu.vector_store %arg12[%c0_53, %c0_54], %402 {strides = array<i32>} : memref<8x8xf32, #tpu.memory_space<vmem>>, vector<8x8xf32>,
    } else {
    }
    %373 = arith.mulf %337, %360 : vector<8x8xf32>
    %374 = arith.subf %346, %373 : vector<8x8xf32>
    %375 = arith.addf %374, %344 : vector<8x8xf32>
    %376 = arith.mulf %355, %347 : vector<8x8xf32>
    %377 = arith.addf %344, %376 : vector<8x8xf32>
    %cst_37 = arith.constant 1.000000e+00 : f32
    %378 = vector.broadcast %cst_37 : f32 to vector<8x8xf32>
    %379 = arith.subf %378, %355 : vector<8x8xf32>
    %380 = arith.mulf %379, %346 : vector<8x8xf32>
    %381 = arith.addf %377, %380 : vector<8x8xf32>
    %cst_38 = arith.constant dense<0.000000e+00> : vector<8xf32>
    %382 = vector.multi_reduction <add>, %375, %cst_38 [1] : vector<8x8xf32> to vector<8xf32>
    %383 = vector.shape_cast %382 : vector<8xf32> to vector<8x1xf32>
    %cst_39 = arith.constant dense<0.000000e+00> : vector<1xf32>
    %384 = vector.multi_reduction <add>, %383, %cst_39 [0] : vector<8x1xf32> to vector<1xf32>
    %385 = vector.shape_cast %384 : vector<1xf32> to vector<1x1xf32>
    %c0_40 = arith.constant 0 : index
    %c0_41 = arith.constant 0 : index
    %386 = vector.load %arg15[%c0_40, %c0_41] : memref<2x1xf32, #tpu.memory_space<vmem>>, vector<1x1xf32>
    tpu.vector_store %arg15[%c0_40, %c0_41], %385 {strides = array<i32>} : memref<2x1xf32, #tpu.memory_space<vmem>>, vector<1x1xf32>,
    %cst_42 = arith.constant dense<0.000000e+00> : vector<8xf32>
    %387 = vector.multi_reduction <add>, %381, %cst_42 [1] : vector<8x8xf32> to vector<8xf32>
    %388 = vector.shape_cast %387 : vector<8xf32> to vector<8x1xf32>
    %cst_43 = arith.constant dense<0.000000e+00> : vector<1xf32>
    %389 = vector.multi_reduction <add>, %388, %cst_43 [0] : vector<8x1xf32> to vector<1xf32>
    %390 = vector.shape_cast %389 : vector<1xf32> to vector<1x1xf32>
    %c1_44 = arith.constant 1 : index
    %c0_45 = arith.constant 0 : index
    %391 = vector.load %arg15[%c1_44, %c0_45] : memref<2x1xf32, #tpu.memory_space<vmem>>, vector<1x1xf32>
    tpu.vector_store %arg15[%c1_44, %c0_45], %390 {strides = array<i32>} : memref<2x1xf32, #tpu.memory_space<vmem>>, vector<1x1xf32>,
    %c0_46 = arith.constant 0 : index
    %c0_47 = arith.constant 0 : index
    %392 = vector.load %arg15[%c0_46, %c0_47] : memref<2x1xf32, #tpu.memory_space<vmem>>, vector<1x1xf32>
    %393 = vector.extract %392[0, 0] : f32 from vector<1x1xf32>
    %394 = arith.index_cast %arg0 : i32 to index
    %395 = memref.load %arg13[%394] : memref<2xf32, #tpu.memory_space<smem>>
    memref.store %393, %arg13[%394] : memref<2xf32, #tpu.memory_space<smem>>
    %c1_48 = arith.constant 1 : index
    %c0_49 = arith.constant 0 : index
    %396 = vector.load %arg15[%c1_48, %c0_49] : memref<2x1xf32, #tpu.memory_space<vmem>>, vector<1x1xf32>
    %397 = vector.extract %396[0, 0] : f32 from vector<1x1xf32>
    %398 = arith.index_cast %arg0 : i32 to index
    %399 = memref.load %arg14[%398] : memref<2xf32, #tpu.memory_space<smem>>
    memref.store %397, %arg14[%398] : memref<2xf32, #tpu.memory_space<smem>>
    return
  }
  func.func @transform_0(%arg0: i32) -> (i32, i32, i32) {
    %c0_i32 = arith.constant 0 : i32
    %c0_i32_0 = arith.constant 0 : i32
    %c0_i32_1 = arith.constant 0 : i32
    return %arg0, %c0_i32, %c0_i32_0 : i32, i32, i32
  }
  func.func @transform_1(%arg0: i32) -> (i32, i32, i32) {
    %c0_i32 = arith.constant 0 : i32
    %c0_i32_0 = arith.constant 0 : i32
    %c0_i32_1 = arith.constant 0 : i32
    return %arg0, %c0_i32, %c0_i32_0 : i32, i32, i32
  }
  func.func @transform_2(%arg0: i32) -> (i32, i32) {
    %c0_i32 = arith.constant 0 : i32
    %c0_i32_0 = arith.constant 0 : i32
    %c0_i32_1 = arith.constant 0 : i32
    return %c0_i32, %c0_i32_0 : i32, i32
  }
  func.func @transform_3(%arg0: i32) -> (i32, i32) {
    %c0_i32 = arith.constant 0 : i32
    %c0_i32_0 = arith.constant 0 : i32
    %c0_i32_1 = arith.constant 0 : i32
    return %c0_i32, %c0_i32_0 : i32, i32
  }
  func.func @transform_4(%arg0: i32) -> (i32, i32) {
    %c0_i32 = arith.constant 0 : i32
    %c0_i32_0 = arith.constant 0 : i32
    %c0_i32_1 = arith.constant 0 : i32
    return %c0_i32, %c0_i32_0 : i32, i32
  }
  func.func @transform_5(%arg0: i32) -> (i32, i32) {
    %c0_i32 = arith.constant 0 : i32
    %c0_i32_0 = arith.constant 0 : i32
    %c0_i32_1 = arith.constant 0 : i32
    return %c0_i32, %c0_i32_0 : i32, i32
  }
  func.func @transform_6(%arg0: i32) -> (i32, i32) {
    %c0_i32 = arith.constant 0 : i32
    %c0_i32_0 = arith.constant 0 : i32
    %c0_i32_1 = arith.constant 0 : i32
    return %c0_i32, %c0_i32_0 : i32, i32
  }
  func.func @transform_7(%arg0: i32) -> i32 {
    %c0_i32 = arith.constant 0 : i32
    %c0_i32_0 = arith.constant 0 : i32
    return %c0_i32 : i32
  }
  func.func @transform_8(%arg0: i32) -> i32 {
    %c0_i32 = arith.constant 0 : i32
    %c0_i32_0 = arith.constant 0 : i32
    return %c0_i32 : i32
  }
  func.func @transform_9(%arg0: i32) -> (i32, i32, i32) {
    %c0_i32 = arith.constant 0 : i32
    %c0_i32_0 = arith.constant 0 : i32
    %c0_i32_1 = arith.constant 0 : i32
    return %arg0, %c0_i32, %c0_i32_0 : i32, i32, i32
  }
  func.func @transform_10(%arg0: i32) -> (i32, i32, i32) {
    %c0_i32 = arith.constant 0 : i32
    %c0_i32_0 = arith.constant 0 : i32
    %c0_i32_1 = arith.constant 0 : i32
    return %arg0, %c0_i32, %c0_i32_0 : i32, i32, i32
  }
  func.func @transform_11(%arg0: i32) -> (i32, i32) {
    %c0_i32 = arith.constant 0 : i32
    %c0_i32_0 = arith.constant 0 : i32
    %c0_i32_1 = arith.constant 0 : i32
    return %c0_i32, %c0_i32_0 : i32, i32
  }
  func.func @transform_12(%arg0: i32) -> i32 {
    %c0_i32 = arith.constant 0 : i32
    %c0_i32_0 = arith.constant 0 : i32
    return %c0_i32 : i32
  }
  func.func @transform_13(%arg0: i32) -> i32 {
    %c0_i32 = arith.constant 0 : i32
    %c0_i32_0 = arith.constant 0 : i32
    return %c0_i32 : i32
  }
}

</mosaic_0001>

<llo_original>
// kernel: actor_forward.1
$region0: #{actor_forward.1}
  #allocation0 [shape = 'u32[]', space=smem, size = 0x4, offset = 0x4, fixed_abs, tag = 'smem constant byte address 0x4 - core index']
  #allocation1 [shape = 'u32[144,128]{1,0:T(1,128)}', space=vmem, size = 0x12000, scoped, tag = 'internal scratch']
  #allocation2 [shape = 'f32[2,1]{1,0:T(2,128)}', space=vmem, size = 0x400, scoped, tag = 'scratch operand']
  #allocation3 [shape = 'f32[1]{0:T(128)S(6)}', space=smem, size = 0x200, scoped, tag = 'scoped memory for actor_forward.1']
  %s0 = inlined_call_operand.vmem [shape: f32[2,8,16], index: 0, kind: input, shape index: {}]
  %s1 = inlined_call_operand.vmem [shape: f32[2,8,8], index: 1, kind: input, shape index: {}]
  %s2 = inlined_call_operand.vmem [shape: f32[8,8], index: 2, kind: input, shape index: {}]
  %s3 = inlined_call_operand.vmem [shape: f32[16,32], index: 3, kind: input, shape index: {}]
  %s4 = inlined_call_operand.vmem [shape: f32[1,32], index: 4, kind: input, shape index: {}]
  %s5 = inlined_call_operand.vmem [shape: f32[32,32], index: 5, kind: input, shape index: {}]
  %s6 = inlined_call_operand.vmem [shape: f32[32,32], index: 6, kind: input, shape index: {}]
  %s7 = inlined_call_operand.vmem [shape: f32[32], index: 7, kind: input, shape index: {}]
  %s8 = inlined_call_operand.<no memory space> [shape: f32[1], index: 8, kind: input, shape index: {}]
  %s9 = inlined_call_operand.hbm [shape: f32[2,8,32], index: 9, kind: output, shape index: {0}]
  %s10 = inlined_call_operand.hbm [shape: f32[2,8,8], index: 10, kind: output, shape index: {1}]
  %s11 = inlined_call_operand.hbm [shape: f32[8,8], index: 11, kind: output, shape index: {2}]
  %s12 = inlined_call_operand.vmem [shape: f32[2], index: 12, kind: output, shape index: {3}]
  %s13 = inlined_call_operand.vmem [shape: f32[2], index: 13, kind: output, shape index: {4}]
  %14 = xla_tuple %s9, %s10, %s11, %s12, %s13
  %s15 = sld [smem:[#allocation0]]
  $region113: #{actor_forward.1} parent=0
    _
  %s17 = ssub.s32 1, %s15
  %s18 = scalar_select 0, %s17, %s15
  %19 = sst [smem:[#allocation3]] %s8
  $region1: #{actor_forward.1} parent=0
    #allocation4 [shape = 'u8[512]{0}', space=smem, size = 0x200, scoped, tag = 'input window, operand 7, single buffered']
    #allocation5 [shape = 's32[2]{0}', space=sflag, size = 0x8, scoped, tag = 'scoped memory for actor_forward.1']
    #allocation6 [shape = 's32[2]{0}', space=sflag, size = 0x8, scoped, tag = 'scoped memory for actor_forward.1']
    #allocation7 [shape = 's32[2]{0}', space=sflag, size = 0x8, scoped, tag = 'scoped memory for actor_forward.1']
    #allocation8 [shape = 'u8[8192]{0}', space=vmem, size = 0x2000, scoped, tag = 'output window, operand 0']
    #allocation9 [shape = 'u8[8192]{0}', space=vmem, size = 0x2000, scoped, tag = 'output window, operand 1']
    #allocation10 [shape = 's32[2]{0}', space=sflag, size = 0x8, scoped, tag = 'scoped memory for actor_forward.1']
    #allocation11 [shape = 'u8[4096]{0}', space=vmem, size = 0x1000, scoped, tag = 'output window, operand 2, single buffered']
    #allocation12 [shape = 'u8[512]{0}', space=smem, size = 0x200, scoped, tag = 'output window, operand 3, single buffered']
    #allocation13 [shape = 'u8[512]{0}', space=smem, size = 0x200, scoped, tag = 'output window, operand 4, single buffered']
    #allocation14 [shape = 's32[1]{0}', space=sflag, size = 0x4, scoped, tag = 'scoped memory for actor_forward.1']
    %20 = vsyncpa [#allocation6], 0
    %21 = vsyncpa [#allocation5], 0
    %s22 = scalar_lea.sflag [#allocation5], 1
    %23 = vsyncpa %s22, 0
    %24 = vsyncpa [#allocation10], 0
    %s25 = scalar_lea.sflag [#allocation10], 1
    %26 = vsyncpa %s25, 0
    %27 = vsyncpa [#allocation7], 0
    %28 = vsyncpa [#allocation14], 0
    loop: start=0, step=1, limit=4
    $region2: #{actor_forward.1} parent=1 // loop_pre_header
      _
    $region3: #{actor_forward.1} parent=1 // loop_header
      %s30 = sphi 0, %s34
      %p31 = scmp.ge.s32.totalorder %s30, 4
      %s40 = sphi 0, %s42
      %s43 = sphi 0, %s40
      %s44 = sphi 0, %s43
      %s60 = sphi 0, %s44
      %s66 = sphi 0, %s68
      %s69 = sphi 0, %s66
      %s70 = sphi 0, %s69
      %s86 = sphi 0, %s70
      %s90 = sphi 0, %s90
      %s92 = sphi 0, %s90
      %s93 = sphi 0, %s92
      %s107 = sphi 0, %s93
      %s111 = sphi 0, %s111
      %s113 = sphi 0, %s111
      %s114 = sphi 0, %s113
      %s128 = sphi 0, %s114
      %s132 = sphi 0, %s132
      %s134 = sphi 0, %s132
      %s135 = sphi 0, %s134
      %s149 = sphi 0, %s135
      %s153 = sphi 0, %s153
      %s155 = sphi 0, %s153
      %s156 = sphi 0, %s155
      %s170 = sphi 0, %s156
      %s174 = sphi 0, %s174
      %s176 = sphi 0, %s174
      %s177 = sphi 0, %s176
      %s191 = sphi 0, %s177
      %s195 = sphi 0, %s195
      %s197 = sphi 0, %s195
      %s198 = sphi 0, %s197
      %s212 = sphi 0, %s198
      %s216 = sphi 0, %s216
      %s218 = sphi 0, %s216
      %s219 = sphi 0, %s218
      %s233 = sphi 0, %s219
      %s239 = sphi 0, %s241
      %s242 = sphi 0, %s239
      %s243 = sphi 0, %s242
      %s259 = sphi 0, %s243
      %s265 = sphi 0, %s267
      %s268 = sphi 0, %s265
      %s269 = sphi 0, %s268
      %s285 = sphi 0, %s269
      %s289 = sphi 0, %s289
      %s291 = sphi 0, %s289
      %s292 = sphi 0, %s291
      %s306 = sphi 0, %s292
      %s310 = sphi 0, %s310
      %s312 = sphi 0, %s310
      %s313 = sphi 0, %s312
      %s327 = sphi 0, %s313
      %s331 = sphi 0, %s331
      %s333 = sphi 0, %s331
      %s334 = sphi 0, %s333
      %s348 = sphi 0, %s334
    $region4: #{actor_forward.1} parent=1 // loop_header_branch
      %33 = sbr.rel (%p31) target = $region8
    $region5: #{actor_forward.1} parent=1 // loop_body
      %s35 = ssub.s32 %s30, 1
      %s36 = ssub.s32 %s30, 2
      %s37 = sadd.s32 %s30, 1
      %s38 = ssub.s32 %s30, %s37
      %p39 = scmp.eq.s32.totalorder %s38, 0
      %s41 = sadd.s32 %s40, 1
      %s42 = scalar_select %p39, %s40, %s41
      %p45 = pneg %p39
      %p46 = scmp.eq.s32.totalorder %s30, 1
      %p47 = por %p45, %p46
      %p48 = scmp.ne.s32.totalorder %s40, %s43
      %p49 = scmp.eq.s32.totalorder %s30, 0
      %p50 = por %p48, %p49
      %p51 = scmp.ne.s32.totalorder %s40, %s43
      %p52 = scmp.eq.s32.totalorder %s35, 1
      %p53 = por %p51, %p52
      %p54 = scmp.ne.s32.totalorder %s43, %s44
      %p55 = scmp.eq.s32.totalorder %s35, 0
      %p56 = por %p54, %p55
      %p57 = scmp.ne.s32.totalorder %s43, %s44
      %p58 = scmp.eq.s32.totalorder %s36, 1
      %p59 = por %p57, %p58
      %p61 = scmp.ne.s32.totalorder %s44, %s60
      %p62 = scmp.eq.s32.totalorder %s36, 0
      %p63 = por %p61, %p62
      %s64 = ssub.s32 %s30, %s37
      %p65 = scmp.eq.s32.totalorder %s64, 0
      %s67 = sadd.s32 %s66, 1
      %s68 = scalar_select %p65, %s66, %s67
      %p71 = pneg %p65
      %p72 = scmp.eq.s32.totalorder %s30, 1
      %p73 = por %p71, %p72
      %p74 = scmp.ne.s32.totalorder %s66, %s69
      %p75 = scmp.eq.s32.totalorder %s30, 0
      %p76 = por %p74, %p75
      %p77 = scmp.ne.s32.totalorder %s66, %s69
      %p78 = scmp.eq.s32.totalorder %s35, 1
      %p79 = por %p77, %p78
      %p80 = scmp.ne.s32.totalorder %s69, %s70
      %p81 = scmp.eq.s32.totalorder %s35, 0
      %p82 = por %p80, %p81
      %p83 = scmp.ne.s32.totalorder %s69, %s70
      %p84 = scmp.eq.s32.totalorder %s36, 1
      %p85 = por %p83, %p84
      %p87 = scmp.ne.s32.totalorder %s70, %s86
      %p88 = scmp.eq.s32.totalorder %s36, 0
      %p89 = por %p87, %p88
      %s91 = sadd.s32 %s90, 1
      %p94 = scmp.eq.s32.totalorder %s30, 1
      %p95 = scmp.ne.s32.totalorder %s90, %s92
      %p96 = scmp.eq.s32.totalorder %s30, 0
      %p97 = por %p95, %p96
      %p98 = scmp.ne.s32.totalorder %s90, %s92
      %p99 = scmp.eq.s32.totalorder %s35, 1
      %p100 = por %p98, %p99
      %p101 = scmp.ne.s32.totalorder %s92, %s93
      %p102 = scmp.eq.s32.totalorder %s35, 0
      %p103 = por %p101, %p102
      %p104 = scmp.ne.s32.totalorder %s92, %s93
      %p105 = scmp.eq.s32.totalorder %s36, 1
      %p106 = por %p104, %p105
      %p108 = scmp.ne.s32.totalorder %s93, %s107
      %p109 = scmp.eq.s32.totalorder %s36, 0
      %p110 = por %p108, %p109
      %s112 = sadd.s32 %s111, 1
      %p115 = scmp.eq.s32.totalorder %s30, 1
      %p116 = scmp.ne.s32.totalorder %s111, %s113
      %p117 = scmp.eq.s32.totalorder %s30, 0
      %p118 = por %p116, %p117
      %p119 = scmp.ne.s32.totalorder %s111, %s113
      %p120 = scmp.eq.s32.totalorder %s35, 1
      %p121 = por %p119, %p120
      %p122 = scmp.ne.s32.totalorder %s113, %s114
      %p123 = scmp.eq.s32.totalorder %s35, 0
      %p124 = por %p122, %p123
      %p125 = scmp.ne.s32.totalorder %s113, %s114
      %p126 = scmp.eq.s32.totalorder %s36, 1
      %p127 = por %p125, %p126
      %p129 = scmp.ne.s32.totalorder %s114, %s128
      %p130 = scmp.eq.s32.totalorder %s36, 0
      %p131 = por %p129, %p130
      %s133 = sadd.s32 %s132, 1
      %p136 = scmp.eq.s32.totalorder %s30, 1
      %p137 = scmp.ne.s32.totalorder %s132, %s134
      %p138 = scmp.eq.s32.totalorder %s30, 0
      %p139 = por %p137, %p138
      %p140 = scmp.ne.s32.totalorder %s132, %s134
      %p141 = scmp.eq.s32.totalorder %s35, 1
      %p142 = por %p140, %p141
      %p143 = scmp.ne.s32.totalorder %s134, %s135
      %p144 = scmp.eq.s32.totalorder %s35, 0
      %p145 = por %p143, %p144
      %p146 = scmp.ne.s32.totalorder %s134, %s135
      %p147 = scmp.eq.s32.totalorder %s36, 1
      %p148 = por %p146, %p147
      %p150 = scmp.ne.s32.totalorder %s135, %s149
      %p151 = scmp.eq.s32.totalorder %s36, 0
      %p152 = por %p150, %p151
      %s154 = sadd.s32 %s153, 1
      %p157 = scmp.eq.s32.totalorder %s30, 1
      %p158 = scmp.ne.s32.totalorder %s153, %s155
      %p159 = scmp.eq.s32.totalorder %s30, 0
      %p160 = por %p158, %p159
      %p161 = scmp.ne.s32.totalorder %s153, %s155
      %p162 = scmp.eq.s32.totalorder %s35, 1
      %p163 = por %p161, %p162
      %p164 = scmp.ne.s32.totalorder %s155, %s156
      %p165 = scmp.eq.s32.totalorder %s35, 0
      %p166 = por %p164, %p165
      %p167 = scmp.ne.s32.totalorder %s155, %s156
      %p168 = scmp.eq.s32.totalorder %s36, 1
      %p169 = por %p167, %p168
      %p171 = scmp.ne.s32.totalorder %s156, %s170
      %p172 = scmp.eq.s32.totalorder %s36, 0
      %p173 = por %p171, %p172
      %s175 = sadd.s32 %s174, 1
      %p178 = scmp.eq.s32.totalorder %s30, 1
      %p179 = scmp.ne.s32.totalorder %s174, %s176
      %p180 = scmp.eq.s32.totalorder %s30, 0
      %p181 = por %p179, %p180
      %p182 = scmp.ne.s32.totalorder %s174, %s176
      %p183 = scmp.eq.s32.totalorder %s35, 1
      %p184 = por %p182, %p183
      %p185 = scmp.ne.s32.totalorder %s176, %s177
      %p186 = scmp.eq.s32.totalorder %s35, 0
      %p187 = por %p185, %p186
      %p188 = scmp.ne.s32.totalorder %s176, %s177
      %p189 = scmp.eq.s32.totalorder %s36, 1
      %p190 = por %p188, %p189
      %p192 = scmp.ne.s32.totalorder %s177, %s191
      %p193 = scmp.eq.s32.totalorder %s36, 0
      %p194 = por %p192, %p193
      %s196 = sadd.s32 %s195, 1
      %p199 = scmp.eq.s32.totalorder %s30, 1
      %p200 = scmp.ne.s32.totalorder %s195, %s197
      %p201 = scmp.eq.s32.totalorder %s30, 0
      %p202 = por %p200, %p201
      %p203 = scmp.ne.s32.totalorder %s195, %s197
      %p204 = scmp.eq.s32.totalorder %s35, 1
      %p205 = por %p203, %p204
      %p206 = scmp.ne.s32.totalorder %s197, %s198
      %p207 = scmp.eq.s32.totalorder %s35, 0
      %p208 = por %p206, %p207
      %p209 = scmp.ne.s32.totalorder %s197, %s198
      %p210 = scmp.eq.s32.totalorder %s36, 1
      %p211 = por %p209, %p210
      %p213 = scmp.ne.s32.totalorder %s198, %s212
      %p214 = scmp.eq.s32.totalorder %s36, 0
      %p215 = por %p213, %p214
      %s217 = sadd.s32 %s216, 1
      %p220 = scmp.eq.s32.totalorder %s30, 1
      %p221 = scmp.ne.s32.totalorder %s216, %s218
      %p222 = scmp.eq.s32.totalorder %s30, 0
      %p223 = por %p221, %p222
      %p224 = scmp.ne.s32.totalorder %s216, %s218
      %p225 = scmp.eq.s32.totalorder %s35, 1
      %p226 = por %p224, %p225
      %p227 = scmp.ne.s32.totalorder %s218, %s219
      %p228 = scmp.eq.s32.totalorder %s35, 0
      %p229 = por %p227, %p228
      %p230 = scmp.ne.s32.totalorder %s218, %s219
      %p231 = scmp.eq.s32.totalorder %s36, 1
      %p232 = por %p230, %p231
      %p234 = scmp.ne.s32.totalorder %s219, %s233
      %p235 = scmp.eq.s32.totalorder %s36, 0
      %p236 = por %p234, %p235
      %s237 = ssub.s32 %s30, %s37
      %p238 = scmp.eq.s32.totalorder %s237, 0
      %s240 = sadd.s32 %s239, 1
      %s241 = scalar_select %p238, %s239, %s240
      %p244 = pneg %p238
      %p245 = scmp.eq.s32.totalorder %s30, 1
      %p246 = por %p244, %p245
      %p247 = scmp.ne.s32.totalorder %s239, %s242
      %p248 = scmp.eq.s32.totalorder %s30, 0
      %p249 = por %p247, %p248
      %p250 = scmp.ne.s32.totalorder %s239, %s242
      %p251 = scmp.eq.s32.totalorder %s35, 1
      %p252 = por %p250, %p251
      %p253 = scmp.ne.s32.totalorder %s242, %s243
      %p254 = scmp.eq.s32.totalorder %s35, 0
      %p255 = por %p253, %p254
      %p256 = scmp.ne.s32.totalorder %s242, %s243
      %p257 = scmp.eq.s32.totalorder %s36, 1
      %p258 = por %p256, %p257
      %p260 = scmp.ne.s32.totalorder %s243, %s259
      %p261 = scmp.eq.s32.totalorder %s36, 0
      %p262 = por %p260, %p261
      %s263 = ssub.s32 %s30, %s37
      %p264 = scmp.eq.s32.totalorder %s263, 0
      %s266 = sadd.s32 %s265, 1
      %s267 = scalar_select %p264, %s265, %s266
      %p270 = pneg %p264
      %p271 = scmp.eq.s32.totalorder %s30, 1
      %p272 = por %p270, %p271
      %p273 = scmp.ne.s32.totalorder %s265, %s268
      %p274 = scmp.eq.s32.totalorder %s30, 0
      %p275 = por %p273, %p274
      %p276 = scmp.ne.s32.totalorder %s265, %s268
      %p277 = scmp.eq.s32.totalorder %s35, 1
      %p278 = por %p276, %p277
      %p279 = scmp.ne.s32.totalorder %s268, %s269
      %p280 = scmp.eq.s32.totalorder %s35, 0
      %p281 = por %p279, %p280
      %p282 = scmp.ne.s32.totalorder %s268, %s269
      %p283 = scmp.eq.s32.totalorder %s36, 1
      %p284 = por %p282, %p283
      %p286 = scmp.ne.s32.totalorder %s269, %s285
      %p287 = scmp.eq.s32.totalorder %s36, 0
      %p288 = por %p286, %p287
      %s290 = sadd.s32 %s289, 1
      %p293 = scmp.eq.s32.totalorder %s30, 1
      %p294 = scmp.ne.s32.totalorder %s289, %s291
      %p295 = scmp.eq.s32.totalorder %s30, 0
      %p296 = por %p294, %p295
      %p297 = scmp.ne.s32.totalorder %s289, %s291
      %p298 = scmp.eq.s32.totalorder %s35, 1
      %p299 = por %p297, %p298
      %p300 = scmp.ne.s32.totalorder %s291, %s292
      %p301 = scmp.eq.s32.totalorder %s35, 0
      %p302 = por %p300, %p301
      %p303 = scmp.ne.s32.totalorder %s291, %s292
      %p304 = scmp.eq.s32.totalorder %s36, 1
      %p305 = por %p303, %p304
      %p307 = scmp.ne.s32.totalorder %s292, %s306
      %p308 = scmp.eq.s32.totalorder %s36, 0
      %p309 = por %p307, %p308
      %s311 = sadd.s32 %s310, 1
      %p314 = scmp.eq.s32.totalorder %s30, 1
      %p315 = scmp.ne.s32.totalorder %s310, %s312
      %p316 = scmp.eq.s32.totalorder %s30, 0
      %p317 = por %p315, %p316
      %p318 = scmp.ne.s32.totalorder %s310, %s312
      %p319 = scmp.eq.s32.totalorder %s35, 1
      %p320 = por %p318, %p319
      %p321 = scmp.ne.s32.totalorder %s312, %s313
      %p322 = scmp.eq.s32.totalorder %s35, 0
      %p323 = por %p321, %p322
      %p324 = scmp.ne.s32.totalorder %s312, %s313
      %p325 = scmp.eq.s32.totalorder %s36, 1
      %p326 = por %p324, %p325
      %p328 = scmp.ne.s32.totalorder %s313, %s327
      %p329 = scmp.eq.s32.totalorder %s36, 0
      %p330 = por %p328, %p329
      %s332 = sadd.s32 %s331, 1
      %p335 = scmp.eq.s32.totalorder %s30, 1
      %p336 = scmp.ne.s32.totalorder %s331, %s333
      %p337 = scmp.eq.s32.totalorder %s30, 0
      %p338 = por %p336, %p337
      %p339 = scmp.ne.s32.totalorder %s331, %s333
      %p340 = scmp.eq.s32.totalorder %s35, 1
      %p341 = por %p339, %p340
      %p342 = scmp.ne.s32.totalorder %s333, %s334
      %p343 = scmp.eq.s32.totalorder %s35, 0
      %p344 = por %p342, %p343
      %p345 = scmp.ne.s32.totalorder %s333, %s334
      %p346 = scmp.eq.s32.totalorder %s36, 1
      %p347 = por %p345, %p346
      %p349 = scmp.ne.s32.totalorder %s334, %s348
      %p350 = scmp.eq.s32.totalorder %s36, 0
      %p351 = por %p349, %p350
      %p352 = scmp.le.s32.totalorder 1, %s30
      %p353 = scmp.lt.s32.totalorder %s30, 3
      %p354 = pnand %p352, %p353
      %p355 = pneg %p354
      // Predicated region
      $region9: #{actor_forward.1} parent=5 // pred_check
        _
      $region10: #{actor_forward.1} parent=5 // pred_check_branch
        %357 = sbr.rel (%p354) target = $region12
      $region11: #{actor_forward.1} parent=5 // pred_region
        %s358 = ssub.s32 %s30, 1
        // Predicated region
        $region13: #{actor_forward.1} parent=11 // pred_check
          %p359 = pneg %p103
        $region14: #{actor_forward.1} parent=11 // pred_check_branch
          %361 = sbr.rel (%p359) target = $region16
        $region15: #{actor_forward.1} parent=11 // pred_region
          _
        $region16: #{actor_forward.1} parent=11 // pred_fallthru
          _
        // Predicated region
        $region17: #{actor_forward.1} parent=11 // pred_check
          %p362 = pneg %p124
        $region18: #{actor_forward.1} parent=11 // pred_check_branch
          %364 = sbr.rel (%p362) target = $region20
        $region19: #{actor_forward.1} parent=11 // pred_region
          _
        $region20: #{actor_forward.1} parent=11 // pred_fallthru
          _
        // Predicated region
        $region21: #{actor_forward.1} parent=11 // pred_check
          %p365 = pneg %p145
        $region22: #{actor_forward.1} parent=11 // pred_check_branch
          %367 = sbr.rel (%p365) target = $region24
        $region23: #{actor_forward.1} parent=11 // pred_region
          _
        $region24: #{actor_forward.1} parent=11 // pred_fallthru
          _
        // Predicated region
        $region25: #{actor_forward.1} parent=11 // pred_check
          %p368 = pneg %p166
        $region26: #{actor_forward.1} parent=11 // pred_check_branch
          %370 = sbr.rel (%p368) target = $region28
        $region27: #{actor_forward.1} parent=11 // pred_region
          _
        $region28: #{actor_forward.1} parent=11 // pred_fallthru
          _
        // Predicated region
        $region29: #{actor_forward.1} parent=11 // pred_check
          %p371 = pneg %p187
        $region30: #{actor_forward.1} parent=11 // pred_check_branch
          %373 = sbr.rel (%p371) target = $region32
        $region31: #{actor_forward.1} parent=11 // pred_region
          _
        $region32: #{actor_forward.1} parent=11 // pred_fallthru
          _
        // Predicated region
        $region33: #{actor_forward.1} parent=11 // pred_check
          %p374 = pneg %p208
        $region34: #{actor_forward.1} parent=11 // pred_check_branch
          %376 = sbr.rel (%p374) target = $region36
        $region35: #{actor_forward.1} parent=11 // pred_region
          %s378 = ssub.s32 16, 16
          %379 = vsyncadd [#allocation6], %s378
          %s381 = sshll.u32 %s7, 4
          %s382 = int_to_ptr.vmem [resolvable:$true] %s381
          %384 = dma.vmem_to_smem %s382, 16, [#allocation4], [#allocation6]
        $region36: #{actor_forward.1} parent=11 // pred_fallthru
          _
        // Predicated region
        $region37: #{actor_forward.1} parent=11 // pred_check
          %p385 = pneg %p229
        $region38: #{actor_forward.1} parent=11 // pred_check_branch
          %387 = sbr.rel (%p385) target = $region40
        $region39: #{actor_forward.1} parent=11 // pred_region
          _
        $region40: #{actor_forward.1} parent=11 // pred_fallthru
          _
      $region12: #{actor_forward.1} parent=5 // pred_fallthru
        _
      %p388 = scmp.lt.s32.totalorder %s30, 2
      // Predicated region
      $region41: #{actor_forward.1} parent=5 // pred_check
        %p389 = pneg %p388
      $region42: #{actor_forward.1} parent=5 // pred_check_branch
        %391 = sbr.rel (%p389) target = $region44
      $region43: #{actor_forward.1} parent=5 // pred_region
        // Predicated region
        $region45: #{actor_forward.1} parent=43 // pred_check
          %p392 = pneg %p50
        $region46: #{actor_forward.1} parent=43 // pred_check_branch
          %394 = sbr.rel (%p392) target = $region48
        $region47: #{actor_forward.1} parent=43 // pred_region
          %p395 = scmp.lt.s32.totalorder %s30, 1
          %s396 = scalar_select %p395, %s30, 1
          %s397 = smul.addr %s396, 8
          %s398 = scalar_lea.vmem %s0, %s397
        $region48: #{actor_forward.1} parent=43 // pred_fallthru
          _
        // Predicated region
        $region49: #{actor_forward.1} parent=43 // pred_check
          %p399 = pneg %p76
        $region50: #{actor_forward.1} parent=43 // pred_check_branch
          %401 = sbr.rel (%p399) target = $region52
        $region51: #{actor_forward.1} parent=43 // pred_region
          %p402 = scmp.lt.s32.totalorder %s30, 1
          %s403 = scalar_select %p402, %s30, 1
          %s404 = smul.addr %s403, 8
          %s405 = scalar_lea.vmem %s1, %s404
        $region52: #{actor_forward.1} parent=43 // pred_fallthru
          _
      $region44: #{actor_forward.1} parent=5 // pred_fallthru
        _
      %p406 = scmp.le.s32.totalorder 1, %s30
      %p407 = scmp.lt.s32.totalorder %s30, 3
      %p408 = pnand %p406, %p407
      %p409 = pneg %p408
      // Predicated region
      $region53: #{actor_forward.1} parent=5 // pred_check
        _
      $region54: #{actor_forward.1} parent=5 // pred_check_branch
        %411 = sbr.rel (%p408) target = $region56
      $region55: #{actor_forward.1} parent=5 // pred_region
        %s412 = ssub.s32 %s30, 1
        // Predicated region
        $region57: #{actor_forward.1} parent=55 // pred_check
          %p413 = pneg %p208
        $region58: #{actor_forward.1} parent=55 // pred_check_branch
          %415 = sbr.rel (%p413) target = $region60
        $region59: #{actor_forward.1} parent=55 // pred_region
          %416 = dma.done [#allocation6], 16
        $region60: #{actor_forward.1} parent=55 // pred_fallthru
          _
        %417 = sfence
        %p418 = scmp.lt.s32.totalorder %s35, 1
        %s419 = scalar_select %p418, %s35, 1
        %s420 = smul.addr %s419, 8
        %s421 = scalar_lea.vmem %s0, %s420
        %p422 = pneg %p56
        %p423 = pneg %p53
        %p424 = scmp.lt.s32.totalorder %s35, 1
        %s425 = scalar_select %p424, %s35, 1
        %s426 = smul.addr %s425, 8
        %s427 = scalar_lea.vmem %s1, %s426
        %p428 = pneg %p82
        %p429 = pneg %p79
        %p430 = pneg %p103
        %p431 = pneg %p100
        %p432 = pneg %p124
        %p433 = pneg %p121
        %p434 = pneg %p145
        %p435 = pneg %p142
        %p436 = pneg %p166
        %p437 = pneg %p163
        %p438 = pneg %p187
        %p439 = pneg %p184
        %p440 = pneg %p208
        %p441 = pneg %p205
        %p442 = pneg %p229
        %p443 = pneg %p226
        %p444 = pneg %p255
        %p445 = pneg %p252
        %s446 = sand.u32 %s242, 1
        %s447 = scalar_lea.sflag [#allocation5], %s446
        %s448 = sand.u32 %s242, 1
        %s449 = smul.addr %s448, 8
        %s450 = scalar_lea.vmem [#allocation8], %s449
        %p451 = pneg %p281
        %p452 = pneg %p278
        %s453 = sand.u32 %s35, 1
        %s454 = scalar_lea.sflag [#allocation10], %s453
        %s455 = sand.u32 %s268, 1
        %s456 = smul.addr %s455, 8
        %s457 = scalar_lea.vmem [#allocation9], %s456
        %p458 = pneg %p302
        %p459 = pneg %p299
        %p460 = pneg %p323
        %p461 = pneg %p320
        %p462 = pneg %p344
        %p463 = pneg %p341
        %p464 = scmp.lt.s32.totalorder %s35, 1
        %s465 = scalar_select %p464, %s35, 1
        %s466 = smul.addr %s465, 8
        %s467 = scalar_lea.vmem %s0, %s466
        %p468 = scmp.lt.s32.totalorder %s35, 1
        %s469 = scalar_select %p468, %s35, 1
        %s470 = smul.addr %s469, 8
        %s471 = scalar_lea.vmem %s1, %s470
        %v472 = vld [vmem:[%s467] sm:$0xff]
        %v473 = vld [vmem:[%s3] sm:$0xff]
        %v474 = vld [vmem:[%s3 + $0x8] sm:$0xff]
        %v475 = vld [vmem:[%s4] sm:$0x1]
        %v477 = vlaneseq
        %v478 = vshrl.u32 %v477, 7
        %v479 = vsub.s32 0, %v478
        %v480 = vrot.slane %v475, %v479
        %vm482 = vcmask 130048
        %v484 = vsel %vm482, %v472, 0
        %486 = vmatprep.subr.mxu0 0.0
        %487 = vmatpush1.msra.mxu0 %v473
        %488 = vmatprep.subr.mxu0 0.0
        %489 = vmatpush1.msra.mxu0 %v474
        %490 = vmatprep.subr.mxu0 0.0
        %491 = vmatpush1.msra.mxu0 0.0
        %492 = vmatprep.subr.mxu0 0.0
        %493 = vmatpush1.msra.mxu0 0.0
        %494 = vmatprep.subr.mxu0 0.0
        %495 = vmatpush1.msra.mxu0 0.0
        %496 = vmatprep.subr.mxu0 0.0
        %497 = vmatpush1.msra.mxu0 0.0
        %498 = vmatprep.subr.mxu0 0.0
        %499 = vmatpush1.msra.mxu0 0.0
        %500 = vmatprep.subr.mxu0 0.0
        %501 = vmatpush1.msra.mxu0 0.0
        %502 = vmatprep.subr.mxu0 0.0
        %503 = vmatpush1.msra.mxu0 0.0
        %504 = vmatprep.subr.mxu0 0.0
        %505 = vmatpush1.msra.mxu0 0.0
        %506 = vmatprep.subr.mxu0 0.0
        %507 = vmatpush1.msra.mxu0 0.0
        %508 = vmatprep.subr.mxu0 0.0
        %509 = vmatpush1.msra.mxu0 0.0
        %510 = vmatprep.subr.mxu0 0.0
        %511 = vmatpush1.msra.mxu0 0.0
        %512 = vmatprep.subr.mxu0 0.0
        %513 = vmatpush1.msra.mxu0 0.0
        %514 = vmatprep.subr.mxu0 0.0
        %515 = vmatpush1.msra.mxu0 0.0
        %516 = vmatprep.subr.mxu0 0.0
        %517 = vmatpush1.msra.mxu0 0.0
        %518 = vmatprep.subr.mxu0 0.0
        %519 = vmatpush1.msra.mxu0 0.0
        %520 = vmatprep.subr.mxu0 0.0
        %521 = vmatpush1.msra.mxu0 0.0
        %522 = vmatprep.subr.mxu0 0.0
        %523 = vmatpush1.msra.mxu0 0.0
        %524 = vmatprep.subr.mxu0 0.0
        %525 = vmatpush1.msra.mxu0 0.0
        %526 = vmatprep.subr.mxu0 0.0
        %527 = vmatpush1.msra.mxu0 0.0
        %528 = vmatprep.subr.mxu0 0.0
        %529 = vmatpush1.msra.mxu0 0.0
        %530 = vmatprep.subr.mxu0 0.0
        %531 = vmatpush1.msra.mxu0 0.0
        %532 = vmatprep.subr.mxu0 0.0
        %533 = vmatpush1.msra.mxu0 0.0
        %534 = vmatprep.subr.mxu0 0.0
        %535 = vmatpush1.msra.mxu0 0.0
        %536 = vmatprep.subr.mxu0 0.0
        %537 = vmatpush1.msra.mxu0 0.0
        %538 = vmatprep.subr.mxu0 0.0
        %539 = vmatpush1.msra.mxu0 0.0
        %540 = vmatprep.subr.mxu0 0.0
        %541 = vmatpush1.msra.mxu0 0.0
        %542 = vmatprep.subr.mxu0 0.0
        %543 = vmatpush1.msra.mxu0 0.0
        %544 = vmatprep.subr.mxu0 0.0
        %545 = vmatpush1.msra.mxu0 0.0
        %546 = vmatprep.subr.mxu0 0.0
        %547 = vmatpush1.msra.mxu0 0.0
        %548 = vmatprep.subr.mxu0 0.0
        %549 = vmatpush1.msra.mxu0 0.0
        %550 = vmatprep.mubr.f32.mxu0 0.0
        %551 = vmatmul.mubr.f32.gmra.mrb[0].mxu0 %v484
        %v552 = vpop.f32.mrb[0].mxu0
        %v553 = vadd.f32 %v480, %v552
        %v554 = vpop.f32.mrb[0].mxu0
        %555 = vdwg.mxu0
        %vm556 = vcmask 261120
        %557 = vst.msk [vmem:[%s450] sm:$0xff] %vm556, %v553
        %v558 = vld [vmem:[%s5] sm:$0xff]
        %v559 = vld [vmem:[%s5 + $0x8] sm:$0xff]
        %v560 = vld [vmem:[%s5 + $0x10] sm:$0xff]
        %v561 = vld [vmem:[%s5 + $0x18] sm:$0xff]
        %v563 = vsel %vm556, %v553, 0
        %565 = vmatprep.subr.mxu0 0.0
        %566 = vmatpush1.msra.mxu0 %v558
        %567 = vmatprep.subr.mxu0 0.0
        %568 = vmatpush1.msra.mxu0 %v559
        %569 = vmatprep.subr.mxu0 0.0
        %570 = vmatpush1.msra.mxu0 %v560
        %571 = vmatprep.subr.mxu0 0.0
        %572 = vmatpush1.msra.mxu0 %v561
        %573 = vmatprep.subr.mxu0 0.0
        %574 = vmatpush1.msra.mxu0 0.0
        %575 = vmatprep.subr.mxu0 0.0
        %576 = vmatpush1.msra.mxu0 0.0
        %577 = vmatprep.subr.mxu0 0.0
        %578 = vmatpush1.msra.mxu0 0.0
        %579 = vmatprep.subr.mxu0 0.0
        %580 = vmatpush1.msra.mxu0 0.0
        %581 = vmatprep.subr.mxu0 0.0
        %582 = vmatpush1.msra.mxu0 0.0
        %583 = vmatprep.subr.mxu0 0.0
        %584 = vmatpush1.msra.mxu0 0.0
        %585 = vmatprep.subr.mxu0 0.0
        %586 = vmatpush1.msra.mxu0 0.0
        %587 = vmatprep.subr.mxu0 0.0
        %588 = vmatpush1.msra.mxu0 0.0
        %589 = vmatprep.subr.mxu0 0.0
        %590 = vmatpush1.msra.mxu0 0.0
        %591 = vmatprep.subr.mxu0 0.0
        %592 = vmatpush1.msra.mxu0 0.0
        %593 = vmatprep.subr.mxu0 0.0
        %594 = vmatpush1.msra.mxu0 0.0
        %595 = vmatprep.subr.mxu0 0.0
        %596 = vmatpush1.msra.mxu0 0.0
        %597 = vmatprep.subr.mxu0 0.0
        %598 = vmatpush1.msra.mxu0 0.0
        %599 = vmatprep.subr.mxu0 0.0
        %600 = vmatpush1.msra.mxu0 0.0
        %601 = vmatprep.subr.mxu0 0.0
        %602 = vmatpush1.msra.mxu0 0.0
        %603 = vmatprep.subr.mxu0 0.0
        %604 = vmatpush1.msra.mxu0 0.0
        %605 = vmatprep.subr.mxu0 0.0
        %606 = vmatpush1.msra.mxu0 0.0
        %607 = vmatprep.subr.mxu0 0.0
        %608 = vmatpush1.msra.mxu0 0.0
        %609 = vmatprep.subr.mxu0 0.0
        %610 = vmatpush1.msra.mxu0 0.0
        %611 = vmatprep.subr.mxu0 0.0
        %612 = vmatpush1.msra.mxu0 0.0
        %613 = vmatprep.subr.mxu0 0.0
        %614 = vmatpush1.msra.mxu0 0.0
        %615 = vmatprep.subr.mxu0 0.0
        %616 = vmatpush1.msra.mxu0 0.0
        %617 = vmatprep.subr.mxu0 0.0
        %618 = vmatpush1.msra.mxu0 0.0
        %619 = vmatprep.subr.mxu0 0.0
        %620 = vmatpush1.msra.mxu0 0.0
        %621 = vmatprep.subr.mxu0 0.0
        %622 = vmatpush1.msra.mxu0 0.0
        %623 = vmatprep.subr.mxu0 0.0
        %624 = vmatpush1.msra.mxu0 0.0
        %625 = vmatprep.subr.mxu0 0.0
        %626 = vmatpush1.msra.mxu0 0.0
        %627 = vmatprep.subr.mxu0 0.0
        %628 = vmatpush1.msra.mxu0 0.0
        %629 = vmatprep.mubr.f32.mxu0 0.0
        %630 = vmatmul.mubr.f32.gmra.mrb[0].mxu0 %v563
        %v631 = vpop.f32.mrb[0].mxu0
        %v632 = vadd.f32 0.0, %v631
        %v633 = vpop.f32.mrb[0].mxu0
        %634 = vdwg.mxu0
        %v635 = vld [vmem:[%s6] sm:$0xff]
        %v636 = vld [vmem:[%s6 + $0x8] sm:$0xff]
        %v637 = vld [vmem:[%s6 + $0x10] sm:$0xff]
        %v638 = vld [vmem:[%s6 + $0x18] sm:$0xff]
        %v640 = vsel %vm556, %v635, 0
        %v643 = vsel %vm556, %v636, 0
        %v646 = vsel %vm556, %v637, 0
        %v649 = vsel %vm556, %v638, 0
        %651 = vmatprep.subr.mxu0 0.0
        %652 = vmatpush1.xpose.msra.mxu0 %v563
        %653 = vmatprep.subr.mxu0 0.0
        %654 = vmatpush1.xpose.msra.mxu0 0.0
        %655 = vmatprep.subr.mxu0 0.0
        %656 = vmatpush1.xpose.msra.mxu0 0.0
        %657 = vmatprep.subr.mxu0 0.0
        %658 = vmatpush1.xpose.msra.mxu0 0.0
        %659 = vmatprep.subr.mxu0 0.0
        %660 = vmatpush1.xpose.msra.mxu0 0.0
        %661 = vmatprep.subr.mxu0 0.0
        %662 = vmatpush1.xpose.msra.mxu0 0.0
        %663 = vmatprep.subr.mxu0 0.0
        %664 = vmatpush1.xpose.msra.mxu0 0.0
        %665 = vmatprep.subr.mxu0 0.0
        %666 = vmatpush1.xpose.msra.mxu0 0.0
        %667 = vmatprep.subr.mxu0 0.0
        %668 = vmatpush1.xpose.msra.mxu0 0.0
        %669 = vmatprep.subr.mxu0 0.0
        %670 = vmatpush1.xpose.msra.mxu0 0.0
        %671 = vmatprep.subr.mxu0 0.0
        %672 = vmatpush1.xpose.msra.mxu0 0.0
        %673 = vmatprep.subr.mxu0 0.0
        %674 = vmatpush1.xpose.msra.mxu0 0.0
        %675 = vmatprep.subr.mxu0 0.0
        %676 = vmatpush1.xpose.msra.mxu0 0.0
        %677 = vmatprep.subr.mxu0 0.0
        %678 = vmatpush1.xpose.msra.mxu0 0.0
        %679 = vmatprep.subr.mxu0 0.0
        %680 = vmatpush1.xpose.msra.mxu0 0.0
        %681 = vmatprep.subr.mxu0 0.0
        %682 = vmatpush1.xpose.msra.mxu0 0.0
        %683 = vmatprep.subr.mxu0 0.0
        %684 = vmatpush1.xpose.msra.mxu0 0.0
        %685 = vmatprep.subr.mxu0 0.0
        %686 = vmatpush1.xpose.msra.mxu0 0.0
        %687 = vmatprep.subr.mxu0 0.0
        %688 = vmatpush1.xpose.msra.mxu0 0.0
        %689 = vmatprep.subr.mxu0 0.0
        %690 = vmatpush1.xpose.msra.mxu0 0.0
        %691 = vmatprep.subr.mxu0 0.0
        %692 = vmatpush1.xpose.msra.mxu0 0.0
        %693 = vmatprep.subr.mxu0 0.0
        %694 = vmatpush1.xpose.msra.mxu0 0.0
        %695 = vmatprep.subr.mxu0 0.0
        %696 = vmatpush1.xpose.msra.mxu0 0.0
        %697 = vmatprep.subr.mxu0 0.0
        %698 = vmatpush1.xpose.msra.mxu0 0.0
        %699 = vmatprep.subr.mxu0 0.0
        %700 = vmatpush1.xpose.msra.mxu0 0.0
        %701 = vmatprep.subr.mxu0 0.0
        %702 = vmatpush1.xpose.msra.mxu0 0.0
        %703 = vmatprep.subr.mxu0 0.0
        %704 = vmatpush1.xpose.msra.mxu0 0.0
        %705 = vmatprep.subr.mxu0 0.0
        %706 = vmatpush1.xpose.msra.mxu0 0.0
        %707 = vmatprep.subr.mxu0 0.0
        %708 = vmatpush1.xpose.msra.mxu0 0.0
        %709 = vmatprep.subr.mxu0 0.0
        %710 = vmatpush1.xpose.msra.mxu0 0.0
        %711 = vmatprep.subr.mxu0 0.0
        %712 = vmatpush1.xpose.msra.mxu0 0.0
        %713 = vmatprep.subr.mxu0 0.0
        %714 = vmatpush1.xpose.msra.mxu0 0.0
        %715 = vmatprep.mubr.f32.mxu0 0.0
        %716 = vmatmul.mubr.f32.gmra.mrb[0].mxu0 %v640
        %v717 = vpop.f32.mrb[0].mxu0
        %v718 = vadd.f32 0.0, %v717
        %v719 = vpop.f32.mrb[0].mxu0
        %720 = vmatprep.mubr.f32.mxu0 0.0
        %721 = vmatmul.mubr.f32.gmra.mrb[0].mxu0 %v643
        %v722 = vpop.f32.mrb[0].mxu0
        %v723 = vadd.f32 0.0, %v722
        %v724 = vpop.f32.mrb[0].mxu0
        %725 = vmatprep.mubr.f32.mxu0 0.0
        %726 = vmatmul.mubr.f32.gmra.mrb[0].mxu0 %v646
        %v727 = vpop.f32.mrb[0].mxu0
        %v728 = vadd.f32 0.0, %v727
        %v729 = vpop.f32.mrb[0].mxu0
        %730 = vmatprep.mubr.f32.mxu0 0.0
        %731 = vmatmul.mubr.f32.gmra.mrb[0].mxu0 %v649
        %v732 = vpop.f32.mrb[0].mxu0
        %v733 = vadd.f32 0.0, %v732
        %v734 = vpop.f32.mrb[0].mxu0
        %735 = vdwg.mxu0
        %v736 = vld [vmem:[%s2] sm:$0xff]
        %s737 = sld [smem:[#allocation3]]
        %v738 = vstv %s737
        %v739 = vadd.f32 %v736, %v738
        %s740 = sld [smem:[#allocation4]]
        %742 = vset.pattern.permute.xlu0 0
        %743 = vperm.xlu0 %742, %v632
        %v744 = vpop.permute.xlu0 %743
        %v746 = vlaneseq
        %v747 = vshrl.u32 %v746, 7
        %v748 = vsub.s32 0, %v747
        %v749 = vrot.slane %v718, %v748
        %v750 = vadd.f32 %v744, %v749
        %v751 = vtanh.pop %v750
        %v752 = vstv %s740
        %v753 = vmul.f32 %v752, %v751
        %v754 = vadd.f32 %v739, %v753
        %s755 = sld [smem:[#allocation4 + $0x1]]
        %756 = vset.pattern.permute.xlu0 1
        %757 = vperm.xlu0 %756, %v632
        %v758 = vpop.permute.xlu0 %757
        %v760 = vlaneseq
        %v761 = vshrl.u32 %v760, 7
        %v762 = vsub.s32 1, %v761
        %v763 = vrot.slane %v718, %v762
        %v764 = vadd.f32 %v758, %v763
        %v765 = vtanh.pop %v764
        %v766 = vstv %s755
        %v767 = vmul.f32 %v766, %v765
        %v768 = vadd.f32 %v754, %v767
        %s769 = sld [smem:[#allocation4 + $0x2]]
        %770 = vset.pattern.permute.xlu0 2
        %771 = vperm.xlu0 %770, %v632
        %v772 = vpop.permute.xlu0 %771
        %v774 = vlaneseq
        %v775 = vshrl.u32 %v774, 7
        %v776 = vsub.s32 2, %v775
        %v777 = vrot.slane %v718, %v776
        %v778 = vadd.f32 %v772, %v777
        %v779 = vtanh.pop %v778
        %v780 = vstv %s769
        %v781 = vmul.f32 %v780, %v779
        %v782 = vadd.f32 %v768, %v781
        %s783 = sld [smem:[#allocation4 + $0x3]]
        %784 = vset.pattern.permute.xlu0 3
        %785 = vperm.xlu0 %784, %v632
        %v786 = vpop.permute.xlu0 %785
        %v788 = vlaneseq
        %v789 = vshrl.u32 %v788, 7
        %v790 = vsub.s32 3, %v789
        %v791 = vrot.slane %v718, %v790
        %v792 = vadd.f32 %v786, %v791
        %v793 = vtanh.pop %v792
        %v794 = vstv %s783
        %v795 = vmul.f32 %v794, %v793
        %v796 = vadd.f32 %v782, %v795
        %s797 = sld [smem:[#allocation4 + $0x4]]
        %798 = vset.pattern.permute.xlu0 4
        %799 = vperm.xlu0 %798, %v632
        %v800 = vpop.permute.xlu0 %799
        %v802 = vlaneseq
        %v803 = vshrl.u32 %v802, 7
        %v804 = vsub.s32 4, %v803
        %v805 = vrot.slane %v718, %v804
        %v806 = vadd.f32 %v800, %v805
        %v807 = vtanh.pop %v806
        %v808 = vstv %s797
        %v809 = vmul.f32 %v808, %v807
        %v810 = vadd.f32 %v796, %v809
        %s811 = sld [smem:[#allocation4 + $0x5]]
        %812 = vset.pattern.permute.xlu0 5
        %813 = vperm.xlu0 %812, %v632
        %v814 = vpop.permute.xlu0 %813
        %v816 = vlaneseq
        %v817 = vshrl.u32 %v816, 7
        %v818 = vsub.s32 5, %v817
        %v819 = vrot.slane %v718, %v818
        %v820 = vadd.f32 %v814, %v819
        %v821 = vtanh.pop %v820
        %v822 = vstv %s811
        %v823 = vmul.f32 %v822, %v821
        %v824 = vadd.f32 %v810, %v823
        %s825 = sld [smem:[#allocation4 + $0x6]]
        %826 = vset.pattern.permute.xlu0 6
        %827 = vperm.xlu0 %826, %v632
        %v828 = vpop.permute.xlu0 %827
        %v830 = vlaneseq
        %v831 = vshrl.u32 %v830, 7
        %v832 = vsub.s32 6, %v831
        %v833 = vrot.slane %v718, %v832
        %v834 = vadd.f32 %v828, %v833
        %v835 = vtanh.pop %v834
        %v836 = vstv %s825
        %v837 = vmul.f32 %v836, %v835
        %v838 = vadd.f32 %v824, %v837
        %s839 = sld [smem:[#allocation4 + $0x7]]
        %840 = vset.pattern.permute.xlu0 7
        %841 = vperm.xlu0 %840, %v632
        %v842 = vpop.permute.xlu0 %841
        %v844 = vlaneseq
        %v845 = vshrl.u32 %v844, 7
        %v846 = vsub.s32 7, %v845
        %v847 = vrot.slane %v718, %v846
        %v848 = vadd.f32 %v842, %v847
        %v849 = vtanh.pop %v848
        %v850 = vstv %s839
        %v851 = vmul.f32 %v850, %v849
        %v852 = vadd.f32 %v838, %v851
        %s853 = sld [smem:[#allocation4 + $0x8]]
        %854 = vset.pattern.permute.xlu0 8
        %855 = vperm.xlu0 %854, %v632
        %v856 = vpop.permute.xlu0 %855
        %v858 = vlaneseq
        %v859 = vshrl.u32 %v858, 7
        %v860 = vsub.s32 0, %v859
        %v861 = vrot.slane %v723, %v860
        %v862 = vadd.f32 %v856, %v861
        %v863 = vtanh.pop %v862
        %v864 = vstv %s853
        %v865 = vmul.f32 %v864, %v863
        %v866 = vadd.f32 %v852, %v865
        %s867 = sld [smem:[#allocation4 + $0x9]]
        %868 = vset.pattern.permute.xlu0 9
        %869 = vperm.xlu0 %868, %v632
        %v870 = vpop.permute.xlu0 %869
        %v872 = vlaneseq
        %v873 = vshrl.u32 %v872, 7
        %v874 = vsub.s32 1, %v873
        %v875 = vrot.slane %v723, %v874
        %v876 = vadd.f32 %v870, %v875
        %v877 = vtanh.pop %v876
        %v878 = vstv %s867
        %v879 = vmul.f32 %v878, %v877
        %v880 = vadd.f32 %v866, %v879
        %s881 = sld [smem:[#allocation4 + $0xa]]
        %882 = vset.pattern.permute.xlu0 10
        %883 = vperm.xlu0 %882, %v632
        %v884 = vpop.permute.xlu0 %883
        %v886 = vlaneseq
        %v887 = vshrl.u32 %v886, 7
        %v888 = vsub.s32 2, %v887
        %v889 = vrot.slane %v723, %v888
        %v890 = vadd.f32 %v884, %v889
        %v891 = vtanh.pop %v890
        %v892 = vstv %s881
        %v893 = vmul.f32 %v892, %v891
        %v894 = vadd.f32 %v880, %v893
        %s895 = sld [smem:[#allocation4 + $0xb]]
        %896 = vset.pattern.permute.xlu0 11
        %897 = vperm.xlu0 %896, %v632
        %v898 = vpop.permute.xlu0 %897
        %v900 = vlaneseq
        %v901 = vshrl.u32 %v900, 7
        %v902 = vsub.s32 3, %v901
        %v903 = vrot.slane %v723, %v902
        %v904 = vadd.f32 %v898, %v903
        %v905 = vtanh.pop %v904
        %v906 = vstv %s895
        %v907 = vmul.f32 %v906, %v905
        %v908 = vadd.f32 %v894, %v907
        %s909 = sld [smem:[#allocation4 + $0xc]]
        %910 = vset.pattern.permute.xlu0 12
        %911 = vperm.xlu0 %910, %v632
        %v912 = vpop.permute.xlu0 %911
        %v914 = vlaneseq
        %v915 = vshrl.u32 %v914, 7
        %v916 = vsub.s32 4, %v915
        %v917 = vrot.slane %v723, %v916
        %v918 = vadd.f32 %v912, %v917
        %v919 = vtanh.pop %v918
        %v920 = vstv %s909
        %v921 = vmul.f32 %v920, %v919
        %v922 = vadd.f32 %v908, %v921
        %s923 = sld [smem:[#allocation4 + $0xd]]
        %924 = vset.pattern.permute.xlu0 13
        %925 = vperm.xlu0 %924, %v632
        %v926 = vpop.permute.xlu0 %925
        %v928 = vlaneseq
        %v929 = vshrl.u32 %v928, 7
        %v930 = vsub.s32 5, %v929
        %v931 = vrot.slane %v723, %v930
        %v932 = vadd.f32 %v926, %v931
        %v933 = vtanh.pop %v932
        %v934 = vstv %s923
        %v935 = vmul.f32 %v934, %v933
        %v936 = vadd.f32 %v922, %v935
        %s937 = sld [smem:[#allocation4 + $0xe]]
        %938 = vset.pattern.permute.xlu0 14
        %939 = vperm.xlu0 %938, %v632
        %v940 = vpop.permute.xlu0 %939
        %v942 = vlaneseq
        %v943 = vshrl.u32 %v942, 7
        %v944 = vsub.s32 6, %v943
        %v945 = vrot.slane %v723, %v944
        %v946 = vadd.f32 %v940, %v945
        %v947 = vtanh.pop %v946
        %v948 = vstv %s937
        %v949 = vmul.f32 %v948, %v947
        %v950 = vadd.f32 %v936, %v949
        %s951 = sld [smem:[#allocation4 + $0xf]]
        %952 = vset.pattern.permute.xlu0 15
        %953 = vperm.xlu0 %952, %v632
        %v954 = vpop.permute.xlu0 %953
        %v956 = vlaneseq
        %v957 = vshrl.u32 %v956, 7
        %v958 = vsub.s32 7, %v957
        %v959 = vrot.slane %v723, %v958
        %v960 = vadd.f32 %v954, %v959
        %v961 = vtanh.pop %v960
        %v962 = vstv %s951
        %v963 = vmul.f32 %v962, %v961
        %v964 = vadd.f32 %v950, %v963
        %s965 = sld [smem:[#allocation4 + $0x10]]
        %966 = vset.pattern.permute.xlu0 16
        %967 = vperm.xlu0 %966, %v632
        %v968 = vpop.permute.xlu0 %967
        %v970 = vlaneseq
        %v971 = vshrl.u32 %v970, 7
        %v972 = vsub.s32 0, %v971
        %v973 = vrot.slane %v728, %v972
        %v974 = vadd.f32 %v968, %v973
        %v975 = vtanh.pop %v974
        %v976 = vstv %s965
        %v977 = vmul.f32 %v976, %v975
        %v978 = vadd.f32 %v964, %v977
        %s979 = sld [smem:[#allocation4 + $0x11]]
        %980 = vset.pattern.permute.xlu0 17
        %981 = vperm.xlu0 %980, %v632
        %v982 = vpop.permute.xlu0 %981
        %v984 = vlaneseq
        %v985 = vshrl.u32 %v984, 7
        %v986 = vsub.s32 1, %v985
        %v987 = vrot.slane %v728, %v986
        %v988 = vadd.f32 %v982, %v987
        %v989 = vtanh.pop %v988
        %v990 = vstv %s979
        %v991 = vmul.f32 %v990, %v989
        %v992 = vadd.f32 %v978, %v991
        %s993 = sld [smem:[#allocation4 + $0x12]]
        %994 = vset.pattern.permute.xlu0 18
        %995 = vperm.xlu0 %994, %v632
        %v996 = vpop.permute.xlu0 %995
        %v998 = vlaneseq
        %v999 = vshrl.u32 %v998, 7
        %v1000 = vsub.s32 2, %v999
        %v1001 = vrot.slane %v728, %v1000
        %v1002 = vadd.f32 %v996, %v1001
        %v1003 = vtanh.pop %v1002
        %v1004 = vstv %s993
        %v1005 = vmul.f32 %v1004, %v1003
        %v1006 = vadd.f32 %v992, %v1005
        %s1007 = sld [smem:[#allocation4 + $0x13]]
        %1008 = vset.pattern.permute.xlu0 19
        %1009 = vperm.xlu0 %1008, %v632
        %v1010 = vpop.permute.xlu0 %1009
        %v1012 = vlaneseq
        %v1013 = vshrl.u32 %v1012, 7
        %v1014 = vsub.s32 3, %v1013
        %v1015 = vrot.slane %v728, %v1014
        %v1016 = vadd.f32 %v1010, %v1015
        %v1017 = vtanh.pop %v1016
        %v1018 = vstv %s1007
        %v1019 = vmul.f32 %v1018, %v1017
        %v1020 = vadd.f32 %v1006, %v1019
        %s1021 = sld [smem:[#allocation4 + $0x14]]
        %1022 = vset.pattern.permute.xlu0 20
        %1023 = vperm.xlu0 %1022, %v632
        %v1024 = vpop.permute.xlu0 %1023
        %v1026 = vlaneseq
        %v1027 = vshrl.u32 %v1026, 7
        %v1028 = vsub.s32 4, %v1027
        %v1029 = vrot.slane %v728, %v1028
        %v1030 = vadd.f32 %v1024, %v1029
        %v1031 = vtanh.pop %v1030
        %v1032 = vstv %s1021
        %v1033 = vmul.f32 %v1032, %v1031
        %v1034 = vadd.f32 %v1020, %v1033
        %s1035 = sld [smem:[#allocation4 + $0x15]]
        %1036 = vset.pattern.permute.xlu0 21
        %1037 = vperm.xlu0 %1036, %v632
        %v1038 = vpop.permute.xlu0 %1037
        %v1040 = vlaneseq
        %v1041 = vshrl.u32 %v1040, 7
        %v1042 = vsub.s32 5, %v1041
        %v1043 = vrot.slane %v728, %v1042
        %v1044 = vadd.f32 %v1038, %v1043
        %v1045 = vtanh.pop %v1044
        %v1046 = vstv %s1035
        %v1047 = vmul.f32 %v1046, %v1045
        %v1048 = vadd.f32 %v1034, %v1047
        %s1049 = sld [smem:[#allocation4 + $0x16]]
        %1050 = vset.pattern.permute.xlu0 22
        %1051 = vperm.xlu0 %1050, %v632
        %v1052 = vpop.permute.xlu0 %1051
        %v1054 = vlaneseq
        %v1055 = vshrl.u32 %v1054, 7
        %v1056 = vsub.s32 6, %v1055
        %v1057 = vrot.slane %v728, %v1056
        %v1058 = vadd.f32 %v1052, %v1057
        %v1059 = vtanh.pop %v1058
        %v1060 = vstv %s1049
        %v1061 = vmul.f32 %v1060, %v1059
        %v1062 = vadd.f32 %v1048, %v1061
        %s1063 = sld [smem:[#allocation4 + $0x17]]
        %1064 = vset.pattern.permute.xlu0 23
        %1065 = vperm.xlu0 %1064, %v632
        %v1066 = vpop.permute.xlu0 %1065
        %v1068 = vlaneseq
        %v1069 = vshrl.u32 %v1068, 7
        %v1070 = vsub.s32 7, %v1069
        %v1071 = vrot.slane %v728, %v1070
        %v1072 = vadd.f32 %v1066, %v1071
        %v1073 = vtanh.pop %v1072
        %v1074 = vstv %s1063
        %v1075 = vmul.f32 %v1074, %v1073
        %v1076 = vadd.f32 %v1062, %v1075
        %s1077 = sld [smem:[#allocation4 + $0x18]]
        %1078 = vset.pattern.permute.xlu0 24
        %1079 = vperm.xlu0 %1078, %v632
        %v1080 = vpop.permute.xlu0 %1079
        %v1082 = vlaneseq
        %v1083 = vshrl.u32 %v1082, 7
        %v1084 = vsub.s32 0, %v1083
        %v1085 = vrot.slane %v733, %v1084
        %v1086 = vadd.f32 %v1080, %v1085
        %v1087 = vtanh.pop %v1086
        %v1088 = vstv %s1077
        %v1089 = vmul.f32 %v1088, %v1087
        %v1090 = vadd.f32 %v1076, %v1089
        %s1091 = sld [smem:[#allocation4 + $0x19]]
        %1092 = vset.pattern.permute.xlu0 25
        %1093 = vperm.xlu0 %1092, %v632
        %v1094 = vpop.permute.xlu0 %1093
        %v1096 = vlaneseq
        %v1097 = vshrl.u32 %v1096, 7
        %v1098 = vsub.s32 1, %v1097
        %v1099 = vrot.slane %v733, %v1098
        %v1100 = vadd.f32 %v1094, %v1099
        %v1101 = vtanh.pop %v1100
        %v1102 = vstv %s1091
        %v1103 = vmul.f32 %v1102, %v1101
        %v1104 = vadd.f32 %v1090, %v1103
        %s1105 = sld [smem:[#allocation4 + $0x1a]]
        %1106 = vset.pattern.permute.xlu0 26
        %1107 = vperm.xlu0 %1106, %v632
        %v1108 = vpop.permute.xlu0 %1107
        %v1110 = vlaneseq
        %v1111 = vshrl.u32 %v1110, 7
        %v1112 = vsub.s32 2, %v1111
        %v1113 = vrot.slane %v733, %v1112
        %v1114 = vadd.f32 %v1108, %v1113
        %v1115 = vtanh.pop %v1114
        %v1116 = vstv %s1105
        %v1117 = vmul.f32 %v1116, %v1115
        %v1118 = vadd.f32 %v1104, %v1117
        %s1119 = sld [smem:[#allocation4 + $0x1b]]
        %1120 = vset.pattern.permute.xlu0 27
        %1121 = vperm.xlu0 %1120, %v632
        %v1122 = vpop.permute.xlu0 %1121
        %v1124 = vlaneseq
        %v1125 = vshrl.u32 %v1124, 7
        %v1126 = vsub.s32 3, %v1125
        %v1127 = vrot.slane %v733, %v1126
        %v1128 = vadd.f32 %v1122, %v1127
        %v1129 = vtanh.pop %v1128
        %v1130 = vstv %s1119
        %v1131 = vmul.f32 %v1130, %v1129
        %v1132 = vadd.f32 %v1118, %v1131
        %s1133 = sld [smem:[#allocation4 + $0x1c]]
        %1134 = vset.pattern.permute.xlu0 28
        %1135 = vperm.xlu0 %1134, %v632
        %v1136 = vpop.permute.xlu0 %1135
        %v1138 = vlaneseq
        %v1139 = vshrl.u32 %v1138, 7
        %v1140 = vsub.s32 4, %v1139
        %v1141 = vrot.slane %v733, %v1140
        %v1142 = vadd.f32 %v1136, %v1141
        %v1143 = vtanh.pop %v1142
        %v1144 = vstv %s1133
        %v1145 = vmul.f32 %v1144, %v1143
        %v1146 = vadd.f32 %v1132, %v1145
        %s1147 = sld [smem:[#allocation4 + $0x1d]]
        %1148 = vset.pattern.permute.xlu0 29
        %1149 = vperm.xlu0 %1148, %v632
        %v1150 = vpop.permute.xlu0 %1149
        %v1152 = vlaneseq
        %v1153 = vshrl.u32 %v1152, 7
        %v1154 = vsub.s32 5, %v1153
        %v1155 = vrot.slane %v733, %v1154
        %v1156 = vadd.f32 %v1150, %v1155
        %v1157 = vtanh.pop %v1156
        %v1158 = vstv %s1147
        %v1159 = vmul.f32 %v1158, %v1157
        %v1160 = vadd.f32 %v1146, %v1159
        %s1161 = sld [smem:[#allocation4 + $0x1e]]
        %1162 = vset.pattern.permute.xlu0 30
        %1163 = vperm.xlu0 %1162, %v632
        %v1164 = vpop.permute.xlu0 %1163
        %v1166 = vlaneseq
        %v1167 = vshrl.u32 %v1166, 7
        %v1168 = vsub.s32 6, %v1167
        %v1169 = vrot.slane %v733, %v1168
        %v1170 = vadd.f32 %v1164, %v1169
        %v1171 = vtanh.pop %v1170
        %v1172 = vstv %s1161
        %v1173 = vmul.f32 %v1172, %v1171
        %v1174 = vadd.f32 %v1160, %v1173
        %s1175 = sld [smem:[#allocation4 + $0x1f]]
        %1176 = vset.pattern.permute.xlu0 31
        %1177 = vperm.xlu0 %1176, %v632
        %v1178 = vpop.permute.xlu0 %1177
        %v1180 = vlaneseq
        %v1181 = vshrl.u32 %v1180, 7
        %v1182 = vsub.s32 7, %v1181
        %v1183 = vrot.slane %v733, %v1182
        %v1184 = vadd.f32 %v1178, %v1183
        %v1185 = vtanh.pop %v1184
        %v1186 = vstv %s1175
        %v1187 = vmul.f32 %v1186, %v1185
        %v1188 = vadd.f32 %v1174, %v1187
        %v1189 = vand.u32 2147483647, %v1188
        %v1190 = vsub.f32 0.0, %v1189
        %v1191 = vmul.f32 %v1190, 1.442695
        %v1192 = vpow.pop %v1191
        %v1193 = vadd.f32 %v1192, 1.0
        %v1194 = vlog2.pop %v1193
        %v1195 = vmul.f32 %v1194, 0.6931472
        %v1196 = vmax.f32 %v1188, 0.0
        %v1197 = vsub.f32 %v1196, %v1188
        %v1198 = vrcp.pop %v1193
        %v1199 = vmul.f32 1.0, %v1198
        %vm1200 = vcmp.ge.f32.partialorder %v1188, 0.0
        %v1201 = vmul.f32 %v1192, %v1199
        %v1202 = vsel %vm1200, %v1199, %v1201
        %v1203 = vld [vmem:[%s471] sm:$0xff]
        %vm1204 = vcmp.lt.f32.partialorder %v1203, %v1202
        %v1205 = vsel %vm1204, 1, 0
        %v1206 = vcvt.s32.f32 %v1205
        %vm1207 = vcmask 64512
        %1208 = vst.msk [vmem:[%s457] sm:$0xff] %vm1207, %v1206
        %p1209 = scmp.eq.s32.totalorder %s35, 0
        // Predicated region
        $region61: #{actor_forward.1} parent=55 // pred_check
          %p1210 = pneg %p1209
        $region62: #{actor_forward.1} parent=55 // pred_check_branch
          %1212 = sbr.rel (%p1210) target = $region64
        $region63: #{actor_forward.1} parent=55 // pred_region
          %1213 = vst.msk [vmem:[#allocation11] sm:$0xff] %vm1207, 0.0
        $region64: #{actor_forward.1} parent=55 // pred_fallthru
          _
        %v1214 = vld [vmem:[#allocation11] sm:$0xff]
        %v1215 = vadd.f32 %v1214, %v1206
        %1216 = vst.msk [vmem:[#allocation11] sm:$0xff] %vm1207, %v1215
        %p1217 = scmp.eq.s32.totalorder %s35, 1
        // Predicated region
        $region65: #{actor_forward.1} parent=55 // pred_check
          %p1218 = pneg %p1217
        $region66: #{actor_forward.1} parent=55 // pred_check_branch
          %1220 = sbr.rel (%p1218) target = $region68
        $region67: #{actor_forward.1} parent=55 // pred_region
          %v1221 = vld [vmem:[#allocation11] sm:$0xff]
          %v1222 = vmul.f32 %v1221, 0.5
          %1223 = vst.msk [vmem:[#allocation11] sm:$0xff] %vm1207, %v1222
        $region68: #{actor_forward.1} parent=55 // pred_fallthru
          _
        %v1224 = vmul.f32 %v1188, %v1206
        %v1225 = vsub.f32 %v1196, %v1224
        %v1226 = vadd.f32 %v1225, %v1195
        %v1227 = vmul.f32 %v1202, %v1197
        %v1228 = vadd.f32 %v1195, %v1227
        %v1229 = vsub.f32 1.0, %v1202
        %v1230 = vmul.f32 %v1229, %v1196
        %v1231 = vadd.f32 %v1228, %v1230
        %v1232 = vsel %vm1207, %v1226, 0.0
        %1233 = vadd.xlane.f32.xlu0 %v1232
        %v1234 = vpop.xlane.xlu0 %1233
        %v1235 = vrot.slane %v1234, 4
        %v1236 = vadd.f32 %v1234, %v1235
        %v1237 = vrot.slane %v1236, 2
        %v1238 = vadd.f32 %v1236, %v1237
        %v1239 = vrot.slane %v1238, 1
        %v1240 = vadd.f32 %v1238, %v1239
        %vm1241 = vcmask 0
        %1242 = vst.msk [vmem:[#allocation2] sm:$0x1] %vm1241, %v1240
        %v1243 = vsel %vm1207, %v1231, 0.0
        %1244 = vadd.xlane.f32.xlu0 %v1243
        %v1245 = vpop.xlane.xlu0 %1244
        %v1246 = vrot.slane %v1245, 4
        %v1247 = vadd.f32 %v1245, %v1246
        %v1248 = vrot.slane %v1247, 2
        %v1249 = vadd.f32 %v1247, %v1248
        %v1250 = vrot.slane %v1249, 1
        %v1251 = vadd.f32 %v1249, %v1250
        %1252 = vst.msk [vmem:[#allocation2 + $0x1] sm:$0x1] %vm1241, %v1251
        %v1253 = vld [vmem:[#allocation2] sm:$0x1]
        %s1254 = vtos %v1253
        %s1255 = scalar_lea.smem [#allocation12], %s35
        %1256 = sst [smem:[%s1255]] %s1254
        %v1257 = vld [vmem:[#allocation2 + $0x1] sm:$0x1]
        %s1258 = vtos %v1257
        %s1259 = scalar_lea.smem [#allocation13], %s35
        %1260 = sst [smem:[%s1259]] %s1258
        %s1261 = sand.u32 %s242, 1
        %s1262 = scalar_lea.sflag [#allocation5], %s1261
        %s1263 = sand.u32 %s242, 1
        %s1264 = smul.addr %s1263, 8
        %s1265 = scalar_lea.vmem [#allocation8], %s1264
        %s1266 = sand.u32 %s35, 1
        %s1267 = scalar_lea.sflag [#allocation10], %s1266
        %s1268 = sand.u32 %s268, 1
        %s1269 = smul.addr %s1268, 8
        %s1270 = scalar_lea.vmem [#allocation9], %s1269
        // Predicated region
        $region69: #{actor_forward.1} parent=55 // pred_check
          %p1271 = pneg %p252
        $region70: #{actor_forward.1} parent=55 // pred_check_branch
          %1273 = sbr.rel (%p1271) target = $region72
        $region71: #{actor_forward.1} parent=55 // pred_region
          %s1275 = ssub.s32 128, 128
          %1276 = vsyncadd %s1262, %s1275
          %s1277 = smul.addr %s35, 128
          %s1278 = scalar_lea.hbm %s9, %s1277
          %s1280 = sshll.u32 %s1265, 4
          %s1281 = int_to_ptr.vmem [resolvable:$true] %s1280
          %1283 = dma.vmem_to_hbm [thread:$0]  %s1281, 128, %s1278, %s1262
        $region72: #{actor_forward.1} parent=55 // pred_fallthru
          _
        // Predicated region
        $region73: #{actor_forward.1} parent=55 // pred_check
          %p1284 = pneg %p278
        $region74: #{actor_forward.1} parent=55 // pred_check_branch
          %1286 = sbr.rel (%p1284) target = $region76
        $region75: #{actor_forward.1} parent=55 // pred_region
          %s1288 = ssub.s32 128, 128
          %1289 = vsyncadd %s1267, %s1288
          %s1290 = smul.addr %s35, 128
          %s1291 = scalar_lea.hbm %s10, %s1290
          %s1293 = sshll.u32 %s1270, 4
          %s1294 = int_to_ptr.vmem [resolvable:$true] %s1293
          %1296 = dma.vmem_to_hbm [thread:$0]  %s1294, 128, %s1291, %s1267
        $region76: #{actor_forward.1} parent=55 // pred_fallthru
          _
        // Predicated region
        $region77: #{actor_forward.1} parent=55 // pred_check
          %p1297 = pneg %p299
        $region78: #{actor_forward.1} parent=55 // pred_check_branch
          %1299 = sbr.rel (%p1297) target = $region80
        $region79: #{actor_forward.1} parent=55 // pred_region
          %s1301 = ssub.s32 128, 128
          %1302 = vsyncadd [#allocation10], %s1301
          %s1304 = sshll.u32 [#allocation11], 4
          %s1305 = int_to_ptr.vmem [resolvable:$true] %s1304
          %1307 = dma.vmem_to_hbm [thread:$0]  %s1305, 128, %s11, [#allocation10]
        $region80: #{actor_forward.1} parent=55 // pred_fallthru
          _
        // Predicated region
        $region81: #{actor_forward.1} parent=55 // pred_check
          %p1308 = pneg %p320
        $region82: #{actor_forward.1} parent=55 // pred_check_branch
          %1310 = sbr.rel (%p1308) target = $region84
        $region83: #{actor_forward.1} parent=55 // pred_region
          %s1312 = ssub.s32 16, 16
          %1313 = vsyncadd [#allocation7], %s1312
          %s1315 = sshll.u32 %s12, 4
          %s1316 = int_to_ptr.vmem [resolvable:$true] %s1315
          %1318 = dma.smem_to_vmem [#allocation12], 16, %s1316, [#allocation7]
        $region84: #{actor_forward.1} parent=55 // pred_fallthru
          _
        // Predicated region
        $region85: #{actor_forward.1} parent=55 // pred_check
          %p1319 = pneg %p341
        $region86: #{actor_forward.1} parent=55 // pred_check_branch
          %1321 = sbr.rel (%p1319) target = $region88
        $region87: #{actor_forward.1} parent=55 // pred_region
          %s1323 = ssub.s32 16, 16
          %1324 = vsyncadd [#allocation14], %s1323
          %s1326 = sshll.u32 %s13, 4
          %s1327 = int_to_ptr.vmem [resolvable:$true] %s1326
          %1329 = dma.smem_to_vmem [#allocation13], 16, %s1327, [#allocation14]
        $region88: #{actor_forward.1} parent=55 // pred_fallthru
          _
        // Predicated region
        $region89: #{actor_forward.1} parent=55 // pred_check
          %p1330 = pneg %p299
        $region90: #{actor_forward.1} parent=55 // pred_check_branch
          %1332 = sbr.rel (%p1330) target = $region92
        $region91: #{actor_forward.1} parent=55 // pred_region
          %1333 = dma.done [#allocation10], 128
        $region92: #{actor_forward.1} parent=55 // pred_fallthru
          _
        // Predicated region
        $region93: #{actor_forward.1} parent=55 // pred_check
          %p1334 = pneg %p320
        $region94: #{actor_forward.1} parent=55 // pred_check_branch
          %1336 = sbr.rel (%p1334) target = $region96
        $region95: #{actor_forward.1} parent=55 // pred_region
          %1337 = dma.done [#allocation7], 16
        $region96: #{actor_forward.1} parent=55 // pred_fallthru
          _
        // Predicated region
        $region97: #{actor_forward.1} parent=55 // pred_check
          %p1338 = pneg %p341
        $region98: #{actor_forward.1} parent=55 // pred_check_branch
          %1340 = sbr.rel (%p1338) target = $region100
        $region99: #{actor_forward.1} parent=55 // pred_region
          %1341 = dma.done [#allocation14], 16
        $region100: #{actor_forward.1} parent=55 // pred_fallthru
          _
        %1342 = sfence
      $region56: #{actor_forward.1} parent=5 // pred_fallthru
        _
      %p1343 = scmp.le.s32.totalorder 2, %s30
      // Predicated region
      $region101: #{actor_forward.1} parent=5 // pred_check
        %p1344 = pneg %p1343
      $region102: #{actor_forward.1} parent=5 // pred_check_branch
        %1346 = sbr.rel (%p1344) target = $region104
      $region103: #{actor_forward.1} parent=5 // pred_region
        %s1347 = ssub.s32 %s30, 2
        // Predicated region
        $region105: #{actor_forward.1} parent=103 // pred_check
          %p1348 = pneg %p258
        $region106: #{actor_forward.1} parent=103 // pred_check_branch
          %1350 = sbr.rel (%p1348) target = $region108
        $region107: #{actor_forward.1} parent=103 // pred_region
          %s1351 = sand.u32 %s243, 1
          %s1352 = scalar_lea.sflag [#allocation5], %s1351
          %s1353 = sand.u32 %s243, 1
          %s1354 = smul.addr %s1353, 8
          %s1355 = scalar_lea.vmem [#allocation8], %s1354
          %1356 = dma.done %s1352, 128
        $region108: #{actor_forward.1} parent=103 // pred_fallthru
          _
        // Predicated region
        $region109: #{actor_forward.1} parent=103 // pred_check
          %p1357 = pneg %p284
        $region110: #{actor_forward.1} parent=103 // pred_check_branch
          %1359 = sbr.rel (%p1357) target = $region112
        $region111: #{actor_forward.1} parent=103 // pred_region
          %s1360 = sand.u32 %s36, 1
          %s1361 = scalar_lea.sflag [#allocation10], %s1360
          %s1362 = sand.u32 %s269, 1
          %s1363 = smul.addr %s1362, 8
          %s1364 = scalar_lea.vmem [#allocation9], %s1363
          %1365 = dma.done %s1361, 128
        $region112: #{actor_forward.1} parent=103 // pred_fallthru
          _
      $region104: #{actor_forward.1} parent=5 // pred_fallthru
        _
    $region6: #{actor_forward.1} parent=1 // loop_footer
      %s34 = sadd.s32 1, %s30
    $region7: #{actor_forward.1} parent=1 // loop_footer_branch
      %29 = sbr.rel target = $region3
    $region8: #{actor_forward.1} parent=1 // loop_exit
      _
    %1366 = vsyncpa [#allocation5], 1
    %s1367 = scalar_lea.sflag [#allocation5], 1
    %1368 = vsyncpa %s1367, 1
    %1369 = vsyncpa [#allocation10], 1
    %s1370 = scalar_lea.sflag [#allocation10], 1
    %1371 = vsyncpa %s1370, 1
    %1372 = vsyncpa [#allocation6], 1
    %s1373 = scalar_lea.sflag [#allocation6], 1
    %1374 = vsyncpa %s1373, 1
    %1375 = vsyncpa [#allocation7], 1
    %s1376 = scalar_lea.sflag [#allocation7], 1
    %1377 = vsyncpa %s1376, 1
    %1378 = vsyncpa [#allocation14], 1

</llo_original>
